<compile_context>
chip_gen: v5e
topology: v5e:2x2
jax: 0.10.0
libtpu: 0.0.40
codegen_flags: <defaults>
</compile_context>

<pallas_src>
import functools

import jax
import jax.numpy as jnp
from jax.experimental import pallas as pl
from jax.experimental.pallas import tpu as pltpu

DT = jnp.bfloat16                 # activation dtype between layers
TM = 512                          # GEMM row tile (flattened N*H*W positions)
ROWS3 = 512                       # target GEMM rows per step for the 3x3 kernel
DECONV_ROWS = 256                 # target GEMM rows per step for the deconv kernel
MP_ROWS = 1024                    # maxpool row tile
VMEM_LIMIT = 32 * 1024 * 1024     # explicit scoped-VMEM budget (safe on v5e/v6e/v7x)


def _round_up(x, m):
    return ((x + m - 1) // m) * m


def _ceil_half(x):
    return -(-x // 2)


# --------------------------------------------------------------------------- #
# Pallas kernels
# --------------------------------------------------------------------------- #
def _gemm_kernel(a_ref, w_ref, v_ref, *rest, relu, has_res, has_post):
    """o = post_affine(act(A @ W + bias [+ res])); v_ref = [bias; post_s; post_b]."""
    if has_res:
        res_ref, o_ref = rest
    else:
        (o_ref,) = rest
    acc = jnp.dot(a_ref[...], w_ref[...], preferred_element_type=jnp.float32)
    acc = acc + v_ref[0:1, :]
    if has_res:
        acc = acc + res_ref[...].astype(jnp.float32)
    if relu:
        acc = jnp.maximum(acc, 0.0)
    if has_post:
        acc = acc * v_ref[1:2, :] + v_ref[2:3, :]
    o_ref[...] = acc.astype(o_ref.dtype)


def _conv3x3_kernel(x_ref, w_ref, b_ref, *rest, relu, has_res, W, tr):
    """3x3/s1 conv with row-concat input (K = 3*Cin): 3 dots, value-chain acc."""
    if has_res:
        res_ref, o_ref = rest
    else:
        (o_ref,) = rest
    k3 = x_ref.shape[-1]                      # 3 * Cin
    rows = tr * W
    acc = None
    for dj in range(3):
        a = x_ref[:, dj:dj + W, :].reshape(rows, k3)
        d = jnp.dot(a, w_ref[dj], preferred_element_type=jnp.float32)
        acc = d if acc is None else acc + d
    acc = acc + b_ref[...]
    if has_res:
        acc = acc + res_ref[...].astype(jnp.float32)
    if relu:
        acc = jnp.maximum(acc, 0.0)
    o_ref[...] = acc.astype(o_ref.dtype)


def _deconv_kernel(a_ref, w_ref, v_ref, *rest, relu, has_res, has_post, tr, W):
    """ConvTranspose2d(2,2) GEMM; output written in NHWC order (rows for the two
    subpixel output rows interleaved in-kernel, columns already (2w+dw, c))."""
    if has_res:
        res_ref, o_ref = rest
    else:
        (o_ref,) = rest
    acc = jnp.dot(a_ref[...], w_ref[...], preferred_element_type=jnp.float32)
    c2 = acc.shape[-1] // 2                    # 2 * Cout (== 128 lanes)
    top = acc[:, :c2].reshape(tr, W, c2)       # dh = 0 output rows
    bot = acc[:, c2:].reshape(tr, W, c2)       # dh = 1 output rows
    y = jnp.stack([top, bot], axis=1).reshape(2 * tr, W, c2)
    y = y + v_ref[0:1, :]
    if has_res:
        y = y + res_ref[...].astype(jnp.float32)
    if relu:
        y = jnp.maximum(y, 0.0)
    if has_post:
        y = y * v_ref[1:2, :] + v_ref[2:3, :]
    o_ref[...] = y.astype(o_ref.dtype)


def _maxpool_kernel(r0_ref, r1_ref, r2_ref, o_ref):
    """3x3/s2/p1 maxpool: vertical max over 3 row views, then the horizontal
    window via static lane/sublane slices of the (Wo+1, 2C) paired layout."""
    m = jnp.maximum(jnp.maximum(r0_ref[...], r1_ref[...]), r2_ref[...])
    wo = m.shape[1] - 1
    c = m.shape[2] // 2
    e0 = m[:, :wo, :c]          # padded col 2*ow
    o1 = m[:, :wo, c:]          # padded col 2*ow + 1
    e2 = m[:, 1:, :c]           # padded col 2*ow + 2
    o_ref[...] = jnp.maximum(jnp.maximum(e0, o1), e2)


# --------------------------------------------------------------------------- #
# Fused GEMM wrapper (1x1 convs, im2col convs)
# --------------------------------------------------------------------------- #
def fused_gemm(a, w, *, bias=None, residual=None, relu=False,
               post_scale=None, post_bias=None, lane_pad=False, out_dtype=DT):
    M, K = a.shape
    Kw, Nc = w.shape
    assert K == Kw

    w = w.astype(jnp.float32)
    b = (jnp.zeros((Nc,), jnp.float32) if bias is None
         else bias.astype(jnp.float32))
    has_post = post_scale is not None
    if has_post and not relu:                      # fold post affine into pre
        ps = post_scale.astype(jnp.float32)
        w = w * ps[None, :]
        b = b * ps + post_bias.astype(jnp.float32)
        has_post = False
    if has_post:
        ps = post_scale.astype(jnp.float32)
        pb = post_bias.astype(jnp.float32)
    else:
        ps = jnp.ones((Nc,), jnp.float32)
        pb = jnp.zeros((Nc,), jnp.float32)

    res = residual
    Np = Nc
    if lane_pad and Nc % 128 != 0:                 # lane-dense output stores
        Np = _round_up(Nc, 128)
        pc = Np - Nc
        w = jnp.pad(w, ((0, 0), (0, pc)))
        b = jnp.pad(b, (0, pc))
        ps = jnp.pad(ps, (0, pc))
        pb = jnp.pad(pb, (0, pc))
        if res is not None:
            res = jnp.pad(res, ((0, 0), (0, pc)))
    vec = jnp.stack([b, ps, pb], axis=0)           # packed (3, Np) fp32

    a_in = a.astype(DT)
    w_in = w.astype(DT)
    res_in = None if res is None else res.astype(DT)

    Mp = M
    if M % 8 != 0:
        Mp = _round_up(M, 8)
        a_in = jnp.pad(a_in, ((0, Mp - M), (0, 0)))
        if res_in is not None:
            res_in = jnp.pad(res_in, ((0, Mp - M), (0, 0)))

    tm = min(TM, Mp)
    if Mp >= 16:                                   # >= 2 grid steps (megacore / pipelining)
        tm = min(tm, _round_up(_ceil_half(Mp), 8))
    grid = pl.cdiv(Mp, tm)                         # ragged last block is masked

    has_res = res_in is not None
    inputs = [a_in, w_in, vec]
    in_specs = [
        pl.BlockSpec((tm, K), lambda i: (i, 0)),
        pl.BlockSpec((K, Np), lambda i: (0, 0)),
        pl.BlockSpec((3, Np), lambda i: (0, 0)),
    ]
    if has_res:
        inputs.append(res_in)
        in_specs.append(pl.BlockSpec((tm, Np), lambda i: (i, 0)))

    out = pl.pallas_call(
        functools.partial(_gemm_kernel, relu=relu, has_res=has_res,
                          has_post=has_post),
        out_shape=jax.ShapeDtypeStruct((Mp, Np), out_dtype),
        grid=(grid,),
        in_specs=in_specs,
        out_specs=pl.BlockSpec((tm, Np), lambda i: (i, 0)),
        compiler_params=pltpu.CompilerParams(
            dimension_semantics=("parallel",),
            vmem_limit_bytes=VMEM_LIMIT),
    )(*inputs)
    if Mp != M:
        out = out[:M]
    if Np != Nc:
        out = out[:, :Nc]
    return out


# --------------------------------------------------------------------------- #
# Conv wrappers
# --------------------------------------------------------------------------- #
def im2col(x, kh, kw, stride, pad):
    # TODO(synk): at large resolutions the strided convs (stem / layer2[0])
    # should gather in-kernel instead of materializing the im2col slab.
    N, H, W, C = x.shape
    Ho = (H + 2 * pad - kh) // stride + 1
    Wo = (W + 2 * pad - kw) // stride + 1
    xp = jnp.pad(x, ((0, 0), (pad, pad), (pad, pad), (0, 0)))
    cols = []
    for i in range(kh):
        for j in range(kw):
            cols.append(xp[:, i:i + stride * Ho:stride, j:j + stride * Wo:stride, :])
    cols = jnp.stack(cols, axis=3)                 # (N, Ho, Wo, kh*kw, C)
    return cols.reshape(N * Ho * Wo, kh * kw * C), (N, Ho, Wo)


def conv2d_im2col(x, w_hwio, bias, *, stride, pad, residual=None, relu=False,
                  out_dtype=DT):
    kh, kw, Cin, Cout = w_hwio.shape
    a, (N, Ho, Wo) = im2col(x, kh, kw, stride, pad)
    res = None if residual is None else residual.reshape(N * Ho * Wo, Cout)
    out = fused_gemm(a, w_hwio.reshape(kh * kw * Cin, Cout), bias=bias,
                     residual=res, relu=relu, out_dtype=out_dtype)
    return out.reshape(N, Ho, Wo, Cout)


def conv3x3_s1(x, w_hwio, bias, *, residual=None, relu=True, out_dtype=DT):
    """3x3 stride-1 pad-1 conv (NHWC). BN scale must already be folded into w."""
    N, H, W, Cin = x.shape
    Cout = w_hwio.shape[-1]
    if W % 8 != 0:
        return conv2d_im2col(x, w_hwio, bias, stride=1, pad=1,
                             residual=residual, relu=relu, out_dtype=out_dtype)
    Wp = W + 2
    NH = N * H
    M = NH * W
    xp = jnp.pad(x, ((0, 0), (1, 1), (1, 1), (0, 0)))
    # Row-concat along channels: xcat[(n,h), w', di*Cin+c] = xp[n, h+di, w', c].
    xcat = jnp.concatenate([xp[:, d:d + H] for d in range(3)], axis=-1)
    xcat = xcat.reshape(NH, Wp, 3 * Cin).astype(DT)
    # wg[dj, di*Cin + c, o] = w[di, dj, c, o]
    wg = jnp.transpose(w_hwio, (1, 0, 2, 3)).reshape(3, 3 * Cin, Cout).astype(DT)
    bvec = bias.reshape(1, Cout).astype(jnp.float32)

    tr = max(1, min(ROWS3 // W, _ceil_half(NH), NH))   # >= 2 grid steps when possible
    grid = pl.cdiv(NH, tr)

    has_res = residual is not None
    inputs = [xcat, wg, bvec]
    in_specs = [pl.BlockSpec((tr, Wp, 3 * Cin), lambda i: (i, 0, 0)),
                pl.BlockSpec((3, 3 * Cin, Cout), lambda i: (0, 0, 0)),
                pl.BlockSpec((1, Cout), lambda i: (0, 0))]
    if has_res:
        inputs.append(residual.reshape(M, Cout).astype(DT))
        in_specs.append(pl.BlockSpec((tr * W, Cout), lambda i: (i, 0)))

    out = pl.pallas_call(
        functools.partial(_conv3x3_kernel, relu=relu, has_res=has_res,
                          W=W, tr=tr),
        out_shape=jax.ShapeDtypeStruct((M, Cout), out_dtype),
        grid=(grid,),
        in_specs=in_specs,
        out_specs=pl.BlockSpec((tr * W, Cout), lambda i: (i, 0)),
        compiler_params=pltpu.CompilerParams(
            dimension_semantics=("parallel",),
            vmem_limit_bytes=VMEM_LIMIT),
    )(*inputs)
    return out.reshape(N, H, W, Cout)


def conv1x1(x, w, bias, *, stride=1, residual=None, relu=False,
            post_scale=None, post_bias=None, lane_pad=False, out_dtype=DT):
    if stride > 1:
        x = x[:, ::stride, ::stride, :]
    N, H, W, Cin = x.shape
    Cout = w.shape[-1]
    a = x.reshape(N * H * W, Cin)
    res = None if residual is None else residual.reshape(N * H * W, Cout)
    out = fused_gemm(a, w.reshape(Cin, Cout), bias=bias, residual=res,
                     relu=relu, post_scale=post_scale, post_bias=post_bias,
                     lane_pad=lane_pad, out_dtype=out_dtype)
    return out.reshape(N, H, W, Cout)


def _deconv2x2_generic(x, w, bias, *, skip=None, relu=False,
                       post_scale=None, post_bias=None, out_dtype=DT):
    """Fallback ConvTranspose2d(2,2) via fused_gemm + XLA (de)interleave."""
    N, H, W, Cin = x.shape
    Cout = w.shape[-1]
    a = x.reshape(N * H * W, Cin)
    wmat = w.reshape(Cin, 4 * Cout)
    b4 = jnp.tile(bias.astype(jnp.float32), 4)
    res = None
    if skip is not None:
        res = skip.reshape(N, H, 2, W, 2, Cout).transpose(0, 1, 3, 2, 4, 5)
        res = res.reshape(N * H * W, 4 * Cout)
    ps = None if post_scale is None else jnp.tile(post_scale.astype(jnp.float32), 4)
    pb = None if post_bias is None else jnp.tile(post_bias.astype(jnp.float32), 4)
    out = fused_gemm(a, wmat, bias=b4, residual=res, relu=relu,
                     post_scale=ps, post_bias=pb, out_dtype=out_dtype)
    out = out.reshape(N, H, W, 2, 2, Cout).transpose(0, 1, 3, 2, 4, 5)
    return out.reshape(N, 2 * H, 2 * W, Cout)


def deconv2x2(x, w, bias, *, skip=None, relu=False,
              post_scale=None, post_bias=None, out_dtype=DT):
    """ConvTranspose2d(kernel=2, stride=2).  w: (Cin, 2, 2, Cout).

    Fast path: output stored directly in NHWC linear order, 128-lane dense,
    no XLA transposes on output or skip (both are free reshapes)."""
    N, H, W, Cin = x.shape
    Cout = w.shape[-1]
    if (W % 8 != 0) or ((2 * Cout) % 128 != 0):
        return _deconv2x2_generic(x, w, bias, skip=skip, relu=relu,
                                  post_scale=post_scale, post_bias=post_bias,
                                  out_dtype=out_dtype)
    C2 = 2 * Cout
    NH = N * H
    a = x.reshape(NH * W, Cin).astype(DT)
    wmat = w.reshape(Cin, 4 * Cout).astype(DT)     # columns = (dh, dw, c)

    has_post = post_scale is not None
    b_row = jnp.tile(bias.astype(jnp.float32), 2)                       # (2C,)
    ps_row = (jnp.tile(post_scale.astype(jnp.float32), 2) if has_post
              else jnp.ones((C2,), jnp.float32))
    pb_row = (jnp.tile(post_bias.astype(jnp.float32), 2) if has_post
              else jnp.zeros((C2,), jnp.float32))
    vec = jnp.stack([b_row, ps_row, pb_row], axis=0)                    # (3, 2C)

    has_res = skip is not None
    tr = max(1, min(DECONV_ROWS // W, _ceil_half(NH), NH))
    grid = pl.cdiv(NH, tr)

    inputs = [a, wmat, vec]
    in_specs = [pl.BlockSpec((tr * W, Cin), lambda i: (i, 0)),
                pl.BlockSpec((Cin, 4 * Cout), lambda i: (0, 0)),
                pl.BlockSpec((3, C2), lambda i: (0, 0))]
    if has_res:
        # skip NHWC (N,2H,2W,C) -> (N*2H, W, 2C): free row-major reshape.
        inputs.append(skip.reshape(2 * NH, W, C2).astype(DT))
        in_specs.append(pl.BlockSpec((2 * tr, W, C2), lambda i: (i, 0, 0)))

    out = pl.pallas_call(
        functools.partial(_deconv_kernel, relu=relu, has_res=has_res,
                          has_post=has_post, tr=tr, W=W),
        out_shape=jax.ShapeDtypeStruct((2 * NH, W, C2), out_dtype),
        grid=(grid,),
        in_specs=in_specs,
        out_specs=pl.BlockSpec((2 * tr, W, C2), lambda i: (i, 0, 0)),
        compiler_params=pltpu.CompilerParams(
            dimension_semantics=("parallel",),
            vmem_limit_bytes=VMEM_LIMIT),
    )(*inputs)
    return out.reshape(N, 2 * H, 2 * W, Cout)      # free reshape (same linear order)


def maxpool_3x3_s2_p1(x):
    """MaxPool2d(kernel=3, stride=2, padding=1) from 3 row-shifted views."""
    N, H, W, C = x.shape
    assert H % 2 == 0 and W % 2 == 0, "maxpool fast path expects even spatial dims"
    Ho, Wo = H // 2, W // 2
    xp = jnp.pad(x, ((0, 0), (1, 1), (1, 1), (0, 0)), constant_values=-jnp.inf)
    NHo = N * Ho
    # (N, Ho, W+2, C) -> (NHo, Wo+1, 2C): free reshape; the stride-2 column
    # selection of the pooling window becomes static lane slices in-kernel.
    rows = [xp[:, i:i + 2 * Ho:2].reshape(NHo, Wo + 1, 2 * C) for i in range(3)]
    tr = max(1, min(MP_ROWS // (Wo + 1), _ceil_half(NHo), NHo))
    grid = pl.cdiv(NHo, tr)
    out = pl.pallas_call(
        _maxpool_kernel,
        out_shape=jax.ShapeDtypeStruct((NHo, Wo, C), x.dtype),
        grid=(grid,),
        in_specs=[pl.BlockSpec((tr, Wo + 1, 2 * C), lambda i: (i, 0, 0))] * 3,
        out_specs=pl.BlockSpec((tr, Wo, C), lambda i: (i, 0, 0)),
        compiler_params=pltpu.CompilerParams(
            dimension_semantics=("parallel",),
            vmem_limit_bytes=VMEM_LIMIT),
    )(*rows)
    return out.reshape(N, Ho, Wo, C)


# --------------------------------------------------------------------------- #
# Model blocks
# --------------------------------------------------------------------------- #
def fold_bn(w, conv_bias, bn):
    """Fold an eval-mode BN that follows the conv into (weights, bias)."""
    w = w.astype(jnp.float32)
    cout = w.shape[-1]
    b = (jnp.zeros((cout,), jnp.float32) if conv_bias is None
         else conv_bias.astype(jnp.float32))
    if bn is not None:
        s, bb = bn
        w = w * s.astype(jnp.float32)
        b = b * s + bb
    return w, b


def compose_1x1_into_stem(w1x1, b1x1, w7):
    """Fold Conv2d(6,3,1) into the following Conv2d(3,64,7,s2,p3).

    Returns a (7,7,7,64) weight acting on [x(3ch), y(3ch), ones(1ch)]; the ones
    channel carries the 1x1 bias so zero-padding stays exact at the borders."""
    w1 = w1x1.reshape(w1x1.shape[-2], w1x1.shape[-1]).astype(jnp.float32)   # (6,3)
    w7f = w7.astype(jnp.float32)                                            # (7,7,3,64)
    w_main = jnp.einsum('ij,hwjo->hwio', w1, w7f)                           # (7,7,6,64)
    w_bias = jnp.einsum('j,hwjo->hwo', b1x1.astype(jnp.float32), w7f)       # (7,7,64)
    return jnp.concatenate([w_main, w_bias[:, :, None, :]], axis=2)         # (7,7,7,64)


def basic_block(h, p, stride=1):
    """torchvision BasicBlock: conv-bn-relu, conv-bn, (+downsample), add, relu."""
    identity = h
    w1, b1 = fold_bn(p['w1'], None, p['bn1'])
    w2, b2 = fold_bn(p['w2'], None, p['bn2'])
    if stride == 1:
        out = conv3x3_s1(h, w1, b1, relu=True)
    else:
        out = conv2d_im2col(h, w1, b1, stride=stride, pad=1, relu=True)
    if 'dw' in p:
        dw, db = fold_bn(p['dw'], None, p['dbn'])
        identity = conv1x1(h, dw, db, stride=stride, relu=False)
    return conv3x3_s1(out, w2, b2, residual=identity, relu=True)


def unet_block_tran2(up_p, x_p, p):
    # TODO(synk): UnetBlock_tran2 source not in the snippet; assumed
    # ConvTranspose2d(up_in, x_in, 2, 2)(up) + skip -> ReLU -> BatchNorm(x_in).
    return deconv2x2(up_p, p['tr_w'], p['tr_b'], skip=x_p, relu=True,
                     post_scale=p['bn_s'], post_bias=p['bn_b'])


def resunet_illum_tran_up2_ds_forward(P, x_nchw, y_nchw, num_classes=2):
    x = jnp.transpose(x_nchw, (0, 2, 3, 1)).astype(DT)
    y = jnp.transpose(y_nchw, (0, 2, 3, 1)).astype(DT)
    N, H, W, _ = x.shape

    # conv1x1_2 (6->3) folded into the 7x7 stem at trace time (exact incl. borders).
    ones = jnp.ones((N, H, W, 1), DT)
    h = jnp.concatenate([x, y, ones], axis=-1)                  # 7 "channels"
    w7c = compose_1x1_into_stem(P['c1x1_2_w'], P['c1x1_2_b'], P['rn_conv1_w'])
    ws, bs = fold_bn(w7c, None, P['rn_bn1'])

    # ---- resnet34 trunk (children()[:6]) ----
    h = conv2d_im2col(h, ws, bs, stride=2, pad=3, relu=True)    # 64 @ H/2
    sfs0 = h                                                    # hook @ relu
    h = maxpool_3x3_s2_p1(h)                                    # 64 @ H/4
    for bp in P['layer1']:
        h = basic_block(h, bp, stride=1)
    sfs1 = h                                                    # hook @ layer1
    h = basic_block(h, P['layer2'][0], stride=2)                # 128 @ H/8
    for bp in P['layer2'][1:]:
        h = basic_block(h, bp, stride=1)
    # F.relu(self.rn(x)): the last BasicBlock already ends in ReLU -> no-op.

    # ---- decoder ----
    h = unet_block_tran2(h, sfs1, P['up2'])                     # 64 @ H/4
    h = unet_block_tran2(h, sfs0, P['up3'])                     # 64 @ H/2
    xo = deconv2x2(h, P['up5_1_w'], P['up5_1_b'])               # 64 @ H
    w52, b52 = fold_bn(P['up5_2_w'], P['up5_2_b'], None)
    out = conv1x1(xo, w52, b52, lane_pad=True, out_dtype=jnp.float32)
    out = out[..., :num_classes]                                # x_out[:, :nc]

    # ---- deep supervision ----
    wds, bds = fold_bn(P['ds_conv_w'], P['ds_conv_b'], P['bn'])  # conv + shared bn
    ds1 = deconv2x2(sfs1, P['ds_deconv_w'], P['ds_deconv_b'])    # 64 @ H/2
    ds1 = deconv2x2(ds1, P['ds_deconv_w'], P['ds_deconv_b'])     # 64 @ H
    ds1 = conv1x1(ds1, wds, bds, lane_pad=True, out_dtype=jnp.float32)
    ds2 = deconv2x2(sfs0, P['ds_deconv_w'], P['ds_deconv_b'])    # 64 @ H
    ds2 = conv1x1(ds2, wds, bds, lane_pad=True, out_dtype=jnp.float32)

    to_nchw = lambda t: jnp.transpose(t, (0, 3, 1, 2))
    return to_nchw(out), to_nchw(ds1), to_nchw(ds2)


# --------------------------------------------------------------------------- #
# Deterministic parameter init
# --------------------------------------------------------------------------- #
class KeyGen:
    def __init__(self, seed):
        self.key = jax.random.PRNGKey(seed)

    def __call__(self):
        self.key, k = jax.random.split(self.key)
        return k


def make_conv(kg, kh, kw, cin, cout):
    return (0.05 * jax.random.normal(kg(), (kh, kw, cin, cout))).astype(jnp.float32)


def make_tconv(kg, cin, cout):
    return (0.05 * jax.random.normal(kg(), (cin, 2, 2, cout))).astype(jnp.float32)


def make_vec(kg, c):
    return (0.05 * jax.random.normal(kg(), (c,))).astype(jnp.float32)


def make_bn(kg, c):
    gamma = 1.0 + 0.1 * jax.random.normal(kg(), (c,))
    beta = 0.1 * jax.random.normal(kg(), (c,))
    mean = 0.1 * jax.random.normal(kg(), (c,))
    var = 0.5 + 0.5 * jax.random.uniform(kg(), (c,))
    scale = gamma / jnp.sqrt(var + 1e-5)
    bias = beta - mean * scale
    return scale.astype(jnp.float32), bias.astype(jnp.float32)


def init_params(seed=1, num_classes=2):
    kg = KeyGen(seed)
    P = {}
    P['c1x1_2_w'] = make_conv(kg, 1, 1, 6, 3)
    P['c1x1_2_b'] = make_vec(kg, 3)
    P['rn_conv1_w'] = make_conv(kg, 7, 7, 3, 64)
    P['rn_bn1'] = make_bn(kg, 64)
    P['layer1'] = [dict(w1=make_conv(kg, 3, 3, 64, 64), bn1=make_bn(kg, 64),
                        w2=make_conv(kg, 3, 3, 64, 64), bn2=make_bn(kg, 64))
                   for _ in range(3)]
    P['layer2'] = [dict(w1=make_conv(kg, 3, 3, 64, 128), bn1=make_bn(kg, 128),
                        w2=make_conv(kg, 3, 3, 128, 128), bn2=make_bn(kg, 128),
                        dw=make_conv(kg, 1, 1, 64, 128), dbn=make_bn(kg, 128))]
    for _ in range(3):
        P['layer2'].append(dict(w1=make_conv(kg, 3, 3, 128, 128), bn1=make_bn(kg, 128),
                                w2=make_conv(kg, 3, 3, 128, 128), bn2=make_bn(kg, 128)))
    # up2 = UnetBlock_tran2(128, 64) ; up3 = UnetBlock_tran2(64, 64)
    P['up2'] = dict(tr_w=make_tconv(kg, 128, 64), tr_b=make_vec(kg, 64))
    P['up2']['bn_s'], P['up2']['bn_b'] = make_bn(kg, 64)
    P['up3'] = dict(tr_w=make_tconv(kg, 64, 64), tr_b=make_vec(kg, 64))
    P['up3']['bn_s'], P['up3']['bn_b'] = make_bn(kg, 64)
    P['up5_1_w'] = make_tconv(kg, 64, 64)
    P['up5_1_b'] = make_vec(kg, 64)
    P['up5_2_w'] = make_conv(kg, 1, 1, 64, num_classes)
    P['up5_2_b'] = make_vec(kg, num_classes)
    P['ds_deconv_w'] = make_tconv(kg, 64, 64)
    P['ds_deconv_b'] = make_vec(kg, 64)
    P['ds_conv_w'] = make_conv(kg, 1, 1, 64, num_classes)
    P['ds_conv_b'] = make_vec(kg, num_classes)
    P['bn'] = make_bn(kg, num_classes)
    return P


# --------------------------------------------------------------------------- #
if __name__ == "__main__":
    key = jax.random.PRNGKey(0)
    kx, ky = jax.random.split(key)
    B, H, W = 2, 64, 64          # 64x64 keeps every 3x3 conv / deconv on the
                                 # fast kernel paths (W % 8 == 0 at all depths)
    x = jax.random.normal(kx, (B, 3, H, W), jnp.float32)
    y = jax.random.normal(ky, (B, 3, H, W), jnp.float32)

    params = init_params(seed=1, num_classes=2)
    out, ds1, ds2 = resunet_illum_tran_up2_ds_forward(params, x, y, num_classes=2)
    out, ds1, ds2 = jax.block_until_ready((out, ds1, ds2))
    assert out.shape == (B, 2, H, W), out.shape
    assert ds1.shape == (B, 2, H, W), ds1.shape
    assert ds2.shape == (B, 2, H, W), ds2.shape
    assert bool(jnp.all(jnp.isfinite(out)))
    assert bool(jnp.all(jnp.isfinite(ds1)))
    assert bool(jnp.all(jnp.isfinite(ds2)))
    print("KERNEL_OK")
</pallas_src>

<mosaic_0001>
module attributes {stable_mosaic.version = 11 : i64} {
  func.func @_gemm_kernel(%arg0: i32, %arg1: memref<512x343xbf16, #tpu.memory_space<vmem>>, %arg2: memref<343x64xbf16, #tpu.memory_space<vmem>>, %arg3: memref<3x64xf32, #tpu.memory_space<vmem>>, %arg4: memref<512x64xbf16, #tpu.memory_space<vmem>>) attributes {dimension_semantics = [#tpu.dimension_semantics<parallel>], iteration_bounds = array<i64: 4>, scalar_prefetch = 0 : i64, scratch_operands = 0 : i64, tpu.core_type = #tpu.core_type<tc>, window_params = [{transform_indices = @transform_0, window_bounds = array<i64: 512, 343>}, {pipeline_mode = #tpu.pipeline_mode<synchronous>, transform_indices = @transform_1, window_bounds = array<i64: 343, 64>}, {pipeline_mode = #tpu.pipeline_mode<synchronous>, transform_indices = @transform_2, window_bounds = array<i64: 3, 64>}, {transform_indices = @transform_3, window_bounds = array<i64: 512, 64>}]} {
    %c0 = arith.constant 0 : index
    %c0_0 = arith.constant 0 : index
    %0 = vector.load %arg1[%c0, %c0_0] : memref<512x343xbf16, #tpu.memory_space<vmem>>, vector<512x343xbf16>
    %c0_1 = arith.constant 0 : index
    %c0_2 = arith.constant 0 : index
    %1 = vector.load %arg2[%c0_1, %c0_2] : memref<343x64xbf16, #tpu.memory_space<vmem>>, vector<343x64xbf16>
    %cst = arith.constant dense<0.000000e+00> : vector<512x64xf32>
    %2 = tpu.matmul %0, %1, %cst {dimension_numbers = #tpu.dot_dimension_numbers<[1], [0], [0], [1], [0, 0, 1, 1], [], []>} : vector<512x343xbf16>, vector<343x64xbf16>, vector<512x64xf32> -> vector<512x64xf32>
    %c0_3 = arith.constant 0 : index
    %c0_4 = arith.constant 0 : index
    %3 = vector.load %arg3[%c0_3, %c0_4] : memref<3x64xf32, #tpu.memory_space<vmem>>, vector<1x64xf32>
    %4 = vector.broadcast %3 : vector<1x64xf32> to vector<512x64xf32>
    %5 = arith.addf %2, %4 : vector<512x64xf32>
    %cst_5 = arith.constant 0.000000e+00 : f32
    %6 = vector.broadcast %cst_5 : f32 to vector<512x64xf32>
    %7 = arith.maximumf %5, %6 : vector<512x64xf32>
    %8 = arith.truncf %7 : vector<512x64xf32> to vector<512x64xbf16>
    %c0_6 = arith.constant 0 : index
    %c0_7 = arith.constant 0 : index
    %9 = vector.load %arg4[%c0_6, %c0_7] : memref<512x64xbf16, #tpu.memory_space<vmem>>, vector<512x64xbf16>
    tpu.vector_store %arg4[%c0_6, %c0_7], %8 {strides = array<i32>} : memref<512x64xbf16, #tpu.memory_space<vmem>>, vector<512x64xbf16>,
    return
  }
  func.func @transform_0(%arg0: i32) -> (i32, i32) {
    %c0_i32 = arith.constant 0 : i32
    %c0_i32_0 = arith.constant 0 : i32
    return %arg0, %c0_i32 : i32, i32
  }
  func.func @transform_1(%arg0: i32) -> (i32, i32) {
    %c0_i32 = arith.constant 0 : i32
    %c0_i32_0 = arith.constant 0 : i32
    %c0_i32_1 = arith.constant 0 : i32
    return %c0_i32, %c0_i32_0 : i32, i32
  }
  func.func @transform_2(%arg0: i32) -> (i32, i32) {
    %c0_i32 = arith.constant 0 : i32
    %c0_i32_0 = arith.constant 0 : i32
    %c0_i32_1 = arith.constant 0 : i32
    return %c0_i32, %c0_i32_0 : i32, i32
  }
  func.func @transform_3(%arg0: i32) -> (i32, i32) {
    %c0_i32 = arith.constant 0 : i32
    %c0_i32_0 = arith.constant 0 : i32
    return %arg0, %c0_i32 : i32, i32
  }
}

</mosaic_0001>

<llo_original>
// kernel: tpu_custom_call.1
$region0: #{tpu_custom_call.1}
  #allocation0 [shape = 'u32[]', space=smem, size = 0x4, offset = 0x4, fixed_abs, tag = 'smem constant byte address 0x4 - core index']
  #allocation1 [shape = 'u32[72,128]{1,0:T(1,128)}', space=vmem, size = 0x9000, scoped, tag = 'internal scratch']
  %s0 = inlined_call_operand.vmem [shape: bf16[2048,343], index: 0, kind: input, shape index: {}]
  %s1 = inlined_call_operand.vmem [shape: bf16[343,64], index: 1, kind: input, shape index: {}]
  %s2 = inlined_call_operand.vmem [shape: f32[3,64], index: 2, kind: input, shape index: {}]
  %s3 = inlined_call_operand.vmem [shape: bf16[2048,64], index: 3, kind: output, shape index: {}]
  %s4 = sld [smem:[#allocation0]]
  $region45: #{tpu_custom_call.1} parent=0
    _
  %s6 = ssub.s32 1, %s4
  %s7 = scalar_select 0, %s6, %s4
  loop: start=0, step=1, limit=6
  $region2: #{tpu_custom_call.1} parent=0 // loop_pre_header
    _
  $region3: #{tpu_custom_call.1} parent=0 // loop_header
    %s9 = sphi 0, %s13
    %p10 = scmp.ge.s32.totalorder %s9, 6
    %s19 = sphi 0, %s21
    %s22 = sphi 0, %s19
    %s23 = sphi 0, %s22
    %s39 = sphi 0, %s23
    %s43 = sphi 0, %s43
    %s45 = sphi 0, %s43
    %s46 = sphi 0, %s45
    %s60 = sphi 0, %s46
    %s64 = sphi 0, %s64
    %s66 = sphi 0, %s64
    %s67 = sphi 0, %s66
    %s81 = sphi 0, %s67
    %s87 = sphi 0, %s89
    %s90 = sphi 0, %s87
    %s91 = sphi 0, %s90
    %s107 = sphi 0, %s91
  $region4: #{tpu_custom_call.1} parent=0 // loop_header_branch
    %12 = sbr.rel (%p10) target = $region8
  $region5: #{tpu_custom_call.1} parent=0 // loop_body
    %s14 = ssub.s32 %s9, 1
    %s15 = ssub.s32 %s9, 2
    %s16 = sadd.s32 %s9, 1
    %s17 = ssub.s32 %s9, %s16
    %p18 = scmp.eq.s32.totalorder %s17, 0
    %s20 = sadd.s32 %s19, 1
    %s21 = scalar_select %p18, %s19, %s20
    %p24 = pneg %p18
    %p25 = scmp.eq.s32.totalorder %s9, 3
    %p26 = por %p24, %p25
    %p27 = scmp.ne.s32.totalorder %s19, %s22
    %p28 = scmp.eq.s32.totalorder %s9, 0
    %p29 = por %p27, %p28
    %p30 = scmp.ne.s32.totalorder %s19, %s22
    %p31 = scmp.eq.s32.totalorder %s14, 3
    %p32 = por %p30, %p31
    %p33 = scmp.ne.s32.totalorder %s22, %s23
    %p34 = scmp.eq.s32.totalorder %s14, 0
    %p35 = por %p33, %p34
    %p36 = scmp.ne.s32.totalorder %s22, %s23
    %p37 = scmp.eq.s32.totalorder %s15, 3
    %p38 = por %p36, %p37
    %p40 = scmp.ne.s32.totalorder %s23, %s39
    %p41 = scmp.eq.s32.totalorder %s15, 0
    %p42 = por %p40, %p41
    %s44 = sadd.s32 %s43, 1
    %p47 = scmp.eq.s32.totalorder %s9, 3
    %p48 = scmp.ne.s32.totalorder %s43, %s45
    %p49 = scmp.eq.s32.totalorder %s9, 0
    %p50 = por %p48, %p49
    %p51 = scmp.ne.s32.totalorder %s43, %s45
    %p52 = scmp.eq.s32.totalorder %s14, 3
    %p53 = por %p51, %p52
    %p54 = scmp.ne.s32.totalorder %s45, %s46
    %p55 = scmp.eq.s32.totalorder %s14, 0
    %p56 = por %p54, %p55
    %p57 = scmp.ne.s32.totalorder %s45, %s46
    %p58 = scmp.eq.s32.totalorder %s15, 3
    %p59 = por %p57, %p58
    %p61 = scmp.ne.s32.totalorder %s46, %s60
    %p62 = scmp.eq.s32.totalorder %s15, 0
    %p63 = por %p61, %p62
    %s65 = sadd.s32 %s64, 1
    %p68 = scmp.eq.s32.totalorder %s9, 3
    %p69 = scmp.ne.s32.totalorder %s64, %s66
    %p70 = scmp.eq.s32.totalorder %s9, 0
    %p71 = por %p69, %p70
    %p72 = scmp.ne.s32.totalorder %s64, %s66
    %p73 = scmp.eq.s32.totalorder %s14, 3
    %p74 = por %p72, %p73
    %p75 = scmp.ne.s32.totalorder %s66, %s67
    %p76 = scmp.eq.s32.totalorder %s14, 0
    %p77 = por %p75, %p76
    %p78 = scmp.ne.s32.totalorder %s66, %s67
    %p79 = scmp.eq.s32.totalorder %s15, 3
    %p80 = por %p78, %p79
    %p82 = scmp.ne.s32.totalorder %s67, %s81
    %p83 = scmp.eq.s32.totalorder %s15, 0
    %p84 = por %p82, %p83
    %s85 = ssub.s32 %s9, %s16
    %p86 = scmp.eq.s32.totalorder %s85, 0
    %s88 = sadd.s32 %s87, 1
    %s89 = scalar_select %p86, %s87, %s88
    %p92 = pneg %p86
    %p93 = scmp.eq.s32.totalorder %s9, 3
    %p94 = por %p92, %p93
    %p95 = scmp.ne.s32.totalorder %s87, %s90
    %p96 = scmp.eq.s32.totalorder %s9, 0
    %p97 = por %p95, %p96
    %p98 = scmp.ne.s32.totalorder %s87, %s90
    %p99 = scmp.eq.s32.totalorder %s14, 3
    %p100 = por %p98, %p99
    %p101 = scmp.ne.s32.totalorder %s90, %s91
    %p102 = scmp.eq.s32.totalorder %s14, 0
    %p103 = por %p101, %p102
    %p104 = scmp.ne.s32.totalorder %s90, %s91
    %p105 = scmp.eq.s32.totalorder %s15, 3
    %p106 = por %p104, %p105
    %p108 = scmp.ne.s32.totalorder %s91, %s107
    %p109 = scmp.eq.s32.totalorder %s15, 0
    %p110 = por %p108, %p109
    %p111 = scmp.le.s32.totalorder 1, %s9
    %p112 = scmp.lt.s32.totalorder %s9, 5
    %p113 = pnand %p111, %p112
    %p114 = pneg %p113
    // Predicated region
    $region9: #{tpu_custom_call.1} parent=5 // pred_check
      _
    $region10: #{tpu_custom_call.1} parent=5 // pred_check_branch
      %116 = sbr.rel (%p113) target = $region12
    $region11: #{tpu_custom_call.1} parent=5 // pred_region
      %s117 = ssub.s32 %s9, 1
      // Predicated region
      $region13: #{tpu_custom_call.1} parent=11 // pred_check
        %p118 = pneg %p56
      $region14: #{tpu_custom_call.1} parent=11 // pred_check_branch
        %120 = sbr.rel (%p118) target = $region16
      $region15: #{tpu_custom_call.1} parent=11 // pred_region
        _
      $region16: #{tpu_custom_call.1} parent=11 // pred_fallthru
        _
      // Predicated region
      $region17: #{tpu_custom_call.1} parent=11 // pred_check
        %p121 = pneg %p77
      $region18: #{tpu_custom_call.1} parent=11 // pred_check_branch
        %123 = sbr.rel (%p121) target = $region20
      $region19: #{tpu_custom_call.1} parent=11 // pred_region
        _
      $region20: #{tpu_custom_call.1} parent=11 // pred_fallthru
        _
    $region12: #{tpu_custom_call.1} parent=5 // pred_fallthru
      _
    %p124 = scmp.lt.s32.totalorder %s9, 4
    // Predicated region
    $region21: #{tpu_custom_call.1} parent=5 // pred_check
      %p125 = pneg %p124
    $region22: #{tpu_custom_call.1} parent=5 // pred_check_branch
      %127 = sbr.rel (%p125) target = $region24
    $region23: #{tpu_custom_call.1} parent=5 // pred_region
      // Predicated region
      $region25: #{tpu_custom_call.1} parent=23 // pred_check
        %p128 = pneg %p29
      $region26: #{tpu_custom_call.1} parent=23 // pred_check_branch
        %130 = sbr.rel (%p128) target = $region28
      $region27: #{tpu_custom_call.1} parent=23 // pred_region
        %s131 = smul.u32 64, %s9
        %p132 = scmp.lt.s32.totalorder %s131, 255
        %s133 = scalar_select %p132, %s131, 255
        %s134 = smul.addr %s133, 3
        %s135 = smul.addr %s134, 4
        %s136 = scalar_lea.vmem %s0, %s135
        %s137 = smul.u32 64, %s9
      $region28: #{tpu_custom_call.1} parent=23 // pred_fallthru
        _
    $region24: #{tpu_custom_call.1} parent=5 // pred_fallthru
      _
    %p138 = scmp.le.s32.totalorder 1, %s9
    %p139 = scmp.lt.s32.totalorder %s9, 5
    %p140 = pnand %p138, %p139
    %p141 = pneg %p140
    // Predicated region
    $region29: #{tpu_custom_call.1} parent=5 // pred_check
      _
    $region30: #{tpu_custom_call.1} parent=5 // pred_check_branch
      %143 = sbr.rel (%p140) target = $region32
    $region31: #{tpu_custom_call.1} parent=5 // pred_region
      %s144 = ssub.s32 %s9, 1
      %s145 = smul.u32 64, %s14
      %p146 = scmp.lt.s32.totalorder %s145, 255
      %s147 = scalar_select %p146, %s145, 255
      %s148 = smul.addr %s147, 3
      %s149 = smul.addr %s148, 4
      %s150 = scalar_lea.vmem %s0, %s149
      %p151 = pneg %p35
      %p152 = pneg %p32
      %p153 = pneg %p56
      %p154 = pneg %p53
      %p155 = pneg %p77
      %p156 = pneg %p74
      %p157 = pneg %p103
      %p158 = pneg %p100
      %s159 = smul.u32 64, %s14
      %p160 = scmp.lt.s32.totalorder %s159, 255
      %s161 = scalar_select %p160, %s159, 255
      %s162 = smul.addr %s161, 4
      %s163 = scalar_lea.vmem %s3, %s162
      %s164 = smul.u32 64, %s14
      %p165 = scmp.lt.s32.totalorder %s164, 255
      %s166 = scalar_select %p165, %s164, 255
      %s167 = smul.addr %s166, 3
      %s168 = smul.addr %s167, 4
      %s169 = scalar_lea.vmem %s0, %s168
      %s170 = smul.u32 64, %s14
      %s171 = smul.u32 64, %s14
      %p172 = scmp.lt.s32.totalorder %s171, 255
      %s173 = scalar_select %p172, %s171, 255
      %s174 = smul.addr %s173, 4
      %s175 = scalar_lea.vmem %s3, %s174
      %s176 = smul.u32 64, %s14
      %v178 = vld [vmem:[%s169] sm:$0xff]
      %v179 = vld [vmem:[%s169 + $0x8] sm:$0xf]
      %v180 = vld [vmem:[%s169 + $0xc] sm:$0xff]
      %v181 = vld [vmem:[%s169 + $0x14] sm:$0xf]
      %v182 = vld [vmem:[%s169 + $0x18] sm:$0xff]
      %v183 = vld [vmem:[%s169 + $0x20] sm:$0xf]
      %v184 = vld [vmem:[%s169 + $0x24] sm:$0xff]
      %v185 = vld [vmem:[%s169 + $0x2c] sm:$0xf]
      %v186 = vld [vmem:[%s169 + $0x30] sm:$0xff]
      %v187 = vld [vmem:[%s169 + $0x38] sm:$0xf]
      %v188 = vld [vmem:[%s169 + $0x3c] sm:$0xff]
      %v189 = vld [vmem:[%s169 + $0x44] sm:$0xf]
      %v190 = vld [vmem:[%s169 + $0x48] sm:$0xff]
      %v191 = vld [vmem:[%s169 + $0x50] sm:$0xf]
      %v192 = vld [vmem:[%s169 + $0x54] sm:$0xff]
      %v193 = vld [vmem:[%s169 + $0x5c] sm:$0xf]
      %v194 = vld [vmem:[%s169 + $0x60] sm:$0xff]
      %v195 = vld [vmem:[%s169 + $0x68] sm:$0xf]
      %v196 = vld [vmem:[%s169 + $0x6c] sm:$0xff]
      %v197 = vld [vmem:[%s169 + $0x74] sm:$0xf]
      %v198 = vld [vmem:[%s169 + $0x78] sm:$0xff]
      %v199 = vld [vmem:[%s169 + $0x80] sm:$0xf]
      %v200 = vld [vmem:[%s169 + $0x84] sm:$0xff]
      %v201 = vld [vmem:[%s169 + $0x8c] sm:$0xf]
      %v202 = vld [vmem:[%s169 + $0x90] sm:$0xff]
      %v203 = vld [vmem:[%s169 + $0x98] sm:$0xf]
      %v204 = vld [vmem:[%s169 + $0x9c] sm:$0xff]
      %v205 = vld [vmem:[%s169 + $0xa4] sm:$0xf]
      %v206 = vld [vmem:[%s169 + $0xa8] sm:$0xff]
      %v207 = vld [vmem:[%s169 + $0xb0] sm:$0xf]
      %v208 = vld [vmem:[%s169 + $0xb4] sm:$0xff]
      %v209 = vld [vmem:[%s169 + $0xbc] sm:$0xf]
      %v210 = vld [vmem:[%s169 + $0xc0] sm:$0xff]
      %v211 = vld [vmem:[%s169 + $0xc8] sm:$0xf]
      %v212 = vld [vmem:[%s169 + $0xcc] sm:$0xff]
      %v213 = vld [vmem:[%s169 + $0xd4] sm:$0xf]
      %v214 = vld [vmem:[%s169 + $0xd8] sm:$0xff]
      %v215 = vld [vmem:[%s169 + $0xe0] sm:$0xf]
      %v216 = vld [vmem:[%s169 + $0xe4] sm:$0xff]
      %v217 = vld [vmem:[%s169 + $0xec] sm:$0xf]
      %v218 = vld [vmem:[%s169 + $0xf0] sm:$0xff]
      %v219 = vld [vmem:[%s169 + $0xf8] sm:$0xf]
      %v220 = vld [vmem:[%s169 + $0xfc] sm:$0xff]
      %v221 = vld [vmem:[%s169 + $0x104] sm:$0xf]
      %v222 = vld [vmem:[%s169 + $0x108] sm:$0xff]
      %v223 = vld [vmem:[%s169 + $0x110] sm:$0xf]
      %v224 = vld [vmem:[%s169 + $0x114] sm:$0xff]
      %v225 = vld [vmem:[%s169 + $0x11c] sm:$0xf]
      %v226 = vld [vmem:[%s169 + $0x120] sm:$0xff]
      %v227 = vld [vmem:[%s169 + $0x128] sm:$0xf]
      %v228 = vld [vmem:[%s169 + $0x12c] sm:$0xff]
      %v229 = vld [vmem:[%s169 + $0x134] sm:$0xf]
      %v230 = vld [vmem:[%s169 + $0x138] sm:$0xff]
      %v231 = vld [vmem:[%s169 + $0x140] sm:$0xf]
      %v232 = vld [vmem:[%s169 + $0x144] sm:$0xff]
      %v233 = vld [vmem:[%s169 + $0x14c] sm:$0xf]
      %v234 = vld [vmem:[%s169 + $0x150] sm:$0xff]
      %v235 = vld [vmem:[%s169 + $0x158] sm:$0xf]
      %v236 = vld [vmem:[%s169 + $0x15c] sm:$0xff]
      %v237 = vld [vmem:[%s169 + $0x164] sm:$0xf]
      %v238 = vld [vmem:[%s169 + $0x168] sm:$0xff]
      %v239 = vld [vmem:[%s169 + $0x170] sm:$0xf]
      %v240 = vld [vmem:[%s169 + $0x174] sm:$0xff]
      %v241 = vld [vmem:[%s169 + $0x17c] sm:$0xf]
      %v242 = vld [vmem:[%s169 + $0x180] sm:$0xff]
      %v243 = vld [vmem:[%s169 + $0x188] sm:$0xf]
      %v244 = vld [vmem:[%s169 + $0x18c] sm:$0xff]
      %v245 = vld [vmem:[%s169 + $0x194] sm:$0xf]
      %v246 = vld [vmem:[%s169 + $0x198] sm:$0xff]
      %v247 = vld [vmem:[%s169 + $0x1a0] sm:$0xf]
      %v248 = vld [vmem:[%s169 + $0x1a4] sm:$0xff]
      %v249 = vld [vmem:[%s169 + $0x1ac] sm:$0xf]
      %v250 = vld [vmem:[%s169 + $0x1b0] sm:$0xff]
      %v251 = vld [vmem:[%s169 + $0x1b8] sm:$0xf]
      %v252 = vld [vmem:[%s169 + $0x1bc] sm:$0xff]
      %v253 = vld [vmem:[%s169 + $0x1c4] sm:$0xf]
      %v254 = vld [vmem:[%s169 + $0x1c8] sm:$0xff]
      %v255 = vld [vmem:[%s169 + $0x1d0] sm:$0xf]
      %v256 = vld [vmem:[%s169 + $0x1d4] sm:$0xff]
      %v257 = vld [vmem:[%s169 + $0x1dc] sm:$0xf]
      %v258 = vld [vmem:[%s169 + $0x1e0] sm:$0xff]
      %v259 = vld [vmem:[%s169 + $0x1e8] sm:$0xf]
      %v260 = vld [vmem:[%s169 + $0x1ec] sm:$0xff]
      %v261 = vld [vmem:[%s169 + $0x1f4] sm:$0xf]
      %v262 = vld [vmem:[%s169 + $0x1f8] sm:$0xff]
      %v263 = vld [vmem:[%s169 + $0x200] sm:$0xf]
      %v264 = vld [vmem:[%s169 + $0x204] sm:$0xff]
      %v265 = vld [vmem:[%s169 + $0x20c] sm:$0xf]
      %v266 = vld [vmem:[%s169 + $0x210] sm:$0xff]
      %v267 = vld [vmem:[%s169 + $0x218] sm:$0xf]
      %v268 = vld [vmem:[%s169 + $0x21c] sm:$0xff]
      %v269 = vld [vmem:[%s169 + $0x224] sm:$0xf]
      %v270 = vld [vmem:[%s169 + $0x228] sm:$0xff]
      %v271 = vld [vmem:[%s169 + $0x230] sm:$0xf]
      %v272 = vld [vmem:[%s169 + $0x234] sm:$0xff]
      %v273 = vld [vmem:[%s169 + $0x23c] sm:$0xf]
      %v274 = vld [vmem:[%s169 + $0x240] sm:$0xff]
      %v275 = vld [vmem:[%s169 + $0x248] sm:$0xf]
      %v276 = vld [vmem:[%s169 + $0x24c] sm:$0xff]
      %v277 = vld [vmem:[%s169 + $0x254] sm:$0xf]
      %v278 = vld [vmem:[%s169 + $0x258] sm:$0xff]
      %v279 = vld [vmem:[%s169 + $0x260] sm:$0xf]
      %v280 = vld [vmem:[%s169 + $0x264] sm:$0xff]
      %v281 = vld [vmem:[%s169 + $0x26c] sm:$0xf]
      %v282 = vld [vmem:[%s169 + $0x270] sm:$0xff]
      %v283 = vld [vmem:[%s169 + $0x278] sm:$0xf]
      %v284 = vld [vmem:[%s169 + $0x27c] sm:$0xff]
      %v285 = vld [vmem:[%s169 + $0x284] sm:$0xf]
      %v286 = vld [vmem:[%s169 + $0x288] sm:$0xff]
      %v287 = vld [vmem:[%s169 + $0x290] sm:$0xf]
      %v288 = vld [vmem:[%s169 + $0x294] sm:$0xff]
      %v289 = vld [vmem:[%s169 + $0x29c] sm:$0xf]
      %v290 = vld [vmem:[%s169 + $0x2a0] sm:$0xff]
      %v291 = vld [vmem:[%s169 + $0x2a8] sm:$0xf]
      %v292 = vld [vmem:[%s169 + $0x2ac] sm:$0xff]
      %v293 = vld [vmem:[%s169 + $0x2b4] sm:$0xf]
      %v294 = vld [vmem:[%s169 + $0x2b8] sm:$0xff]
      %v295 = vld [vmem:[%s169 + $0x2c0] sm:$0xf]
      %v296 = vld [vmem:[%s169 + $0x2c4] sm:$0xff]
      %v297 = vld [vmem:[%s169 + $0x2cc] sm:$0xf]
      %v298 = vld [vmem:[%s169 + $0x2d0] sm:$0xff]
      %v299 = vld [vmem:[%s169 + $0x2d8] sm:$0xf]
      %v300 = vld [vmem:[%s169 + $0x2dc] sm:$0xff]
      %v301 = vld [vmem:[%s169 + $0x2e4] sm:$0xf]
      %v302 = vld [vmem:[%s169 + $0x2e8] sm:$0xff]
      %v303 = vld [vmem:[%s169 + $0x2f0] sm:$0xf]
      %v304 = vld [vmem:[%s169 + $0x2f4] sm:$0xff]
      %v305 = vld [vmem:[%s169 + $0x2fc] sm:$0xf]
      %v306 = vld [vmem:[%s1] sm:$0xf]
      %v307 = vld [vmem:[%s1 + $0x4] sm:$0xf]
      %v308 = vld [vmem:[%s1 + $0x8] sm:$0xf]
      %v309 = vld [vmem:[%s1 + $0xc] sm:$0xf]
      %v310 = vld [vmem:[%s1 + $0x10] sm:$0xf]
      %v311 = vld [vmem:[%s1 + $0x14] sm:$0xf]
      %v312 = vld [vmem:[%s1 + $0x18] sm:$0xf]
      %v313 = vld [vmem:[%s1 + $0x1c] sm:$0xf]
      %v314 = vld [vmem:[%s1 + $0x20] sm:$0xf]
      %v315 = vld [vmem:[%s1 + $0x24] sm:$0xf]
      %v316 = vld [vmem:[%s1 + $0x28] sm:$0xf]
      %v317 = vld [vmem:[%s1 + $0x2c] sm:$0xf]
      %v318 = vld [vmem:[%s1 + $0x30] sm:$0xf]
      %v319 = vld [vmem:[%s1 + $0x34] sm:$0xf]
      %v320 = vld [vmem:[%s1 + $0x38] sm:$0xf]
      %v321 = vld [vmem:[%s1 + $0x3c] sm:$0xf]
      %v322 = vld [vmem:[%s1 + $0x40] sm:$0xf]
      %v323 = vld [vmem:[%s1 + $0x44] sm:$0xf]
      %v324 = vld [vmem:[%s1 + $0x48] sm:$0xf]
      %v325 = vld [vmem:[%s1 + $0x4c] sm:$0xf]
      %v326 = vld [vmem:[%s1 + $0x50] sm:$0xf]
      %v327 = vld [vmem:[%s1 + $0x54] sm:$0xf]
      %v328 = vld [vmem:[%s1 + $0x58] sm:$0xf]
      %v329 = vld [vmem:[%s1 + $0x5c] sm:$0xf]
      %v330 = vld [vmem:[%s1 + $0x60] sm:$0xf]
      %v331 = vld [vmem:[%s1 + $0x64] sm:$0xf]
      %v332 = vld [vmem:[%s1 + $0x68] sm:$0xf]
      %v333 = vld [vmem:[%s1 + $0x6c] sm:$0xf]
      %v334 = vld [vmem:[%s1 + $0x70] sm:$0xf]
      %v335 = vld [vmem:[%s1 + $0x74] sm:$0xf]
      %v336 = vld [vmem:[%s1 + $0x78] sm:$0xf]
      %v337 = vld [vmem:[%s1 + $0x7c] sm:$0xf]
      %v338 = vld [vmem:[%s1 + $0x80] sm:$0xf]
      %v339 = vld [vmem:[%s1 + $0x84] sm:$0xf]
      %v340 = vld [vmem:[%s1 + $0x88] sm:$0xf]
      %v341 = vld [vmem:[%s1 + $0x8c] sm:$0xf]
      %v342 = vld [vmem:[%s1 + $0x90] sm:$0xf]
      %v343 = vld [vmem:[%s1 + $0x94] sm:$0xf]
      %v344 = vld [vmem:[%s1 + $0x98] sm:$0xf]
      %v345 = vld [vmem:[%s1 + $0x9c] sm:$0xf]
      %v346 = vld [vmem:[%s1 + $0xa0] sm:$0xf]
      %v347 = vld [vmem:[%s1 + $0xa4] sm:$0xf]
      %v348 = vld [vmem:[%s1 + $0xa8] sm:$0xf]
      %v349 = vld [vmem:[%s2] sm:$0x1]
      %v350 = vperm.slane %v349, 0
      %v479 = vunpack.c.l.b16 %v178
      %v480 = vunpack.c.h.b16 %v178
      %v481 = vunpack.c.l.b16 %v179
      %v482 = vunpack.c.l.b16 %v180
      %v483 = vunpack.c.h.b16 %v180
      %v484 = vunpack.c.l.b16 %v181
      %v485 = vunpack.c.l.b16 %v182
      %v486 = vunpack.c.h.b16 %v182
      %v487 = vunpack.c.l.b16 %v183
      %v488 = vunpack.c.l.b16 %v184
      %v489 = vunpack.c.h.b16 %v184
      %v490 = vunpack.c.l.b16 %v185
      %v491 = vunpack.c.l.b16 %v186
      %v492 = vunpack.c.h.b16 %v186
      %v493 = vunpack.c.l.b16 %v187
      %v494 = vunpack.c.l.b16 %v188
      %v495 = vunpack.c.h.b16 %v188
      %v496 = vunpack.c.l.b16 %v189
      %v497 = vunpack.c.l.b16 %v190
      %v498 = vunpack.c.h.b16 %v190
      %v499 = vunpack.c.l.b16 %v191
      %v500 = vunpack.c.l.b16 %v192
      %v501 = vunpack.c.h.b16 %v192
      %v502 = vunpack.c.l.b16 %v193
      %v503 = vunpack.c.l.b16 %v194
      %v504 = vunpack.c.h.b16 %v194
      %v505 = vunpack.c.l.b16 %v195
      %v506 = vunpack.c.l.b16 %v196
      %v507 = vunpack.c.h.b16 %v196
      %v508 = vunpack.c.l.b16 %v197
      %v509 = vunpack.c.l.b16 %v198
      %v510 = vunpack.c.h.b16 %v198
      %v511 = vunpack.c.l.b16 %v199
      %v512 = vunpack.c.l.b16 %v200
      %v513 = vunpack.c.h.b16 %v200
      %v514 = vunpack.c.l.b16 %v201
      %v515 = vunpack.c.l.b16 %v202
      %v516 = vunpack.c.h.b16 %v202
      %v517 = vunpack.c.l.b16 %v203
      %v518 = vunpack.c.l.b16 %v204
      %v519 = vunpack.c.h.b16 %v204
      %v520 = vunpack.c.l.b16 %v205
      %v521 = vunpack.c.l.b16 %v206
      %v522 = vunpack.c.h.b16 %v206
      %v523 = vunpack.c.l.b16 %v207
      %v524 = vunpack.c.l.b16 %v208
      %v525 = vunpack.c.h.b16 %v208
      %v526 = vunpack.c.l.b16 %v209
      %v527 = vunpack.c.l.b16 %v210
      %v528 = vunpack.c.h.b16 %v210
      %v529 = vunpack.c.l.b16 %v211
      %v530 = vunpack.c.l.b16 %v212
      %v531 = vunpack.c.h.b16 %v212
      %v532 = vunpack.c.l.b16 %v213
      %v533 = vunpack.c.l.b16 %v214
      %v534 = vunpack.c.h.b16 %v214
      %v535 = vunpack.c.l.b16 %v215
      %v536 = vunpack.c.l.b16 %v216
      %v537 = vunpack.c.h.b16 %v216
      %v538 = vunpack.c.l.b16 %v217
      %v539 = vunpack.c.l.b16 %v218
      %v540 = vunpack.c.h.b16 %v218
      %v541 = vunpack.c.l.b16 %v219
      %v542 = vunpack.c.l.b16 %v220
      %v543 = vunpack.c.h.b16 %v220
      %v544 = vunpack.c.l.b16 %v221
      %v545 = vunpack.c.l.b16 %v222
      %v546 = vunpack.c.h.b16 %v222
      %v547 = vunpack.c.l.b16 %v223
      %v548 = vunpack.c.l.b16 %v224
      %v549 = vunpack.c.h.b16 %v224
      %v550 = vunpack.c.l.b16 %v225
      %v551 = vunpack.c.l.b16 %v226
      %v552 = vunpack.c.h.b16 %v226
      %v553 = vunpack.c.l.b16 %v227
      %v554 = vunpack.c.l.b16 %v228
      %v555 = vunpack.c.h.b16 %v228
      %v556 = vunpack.c.l.b16 %v229
      %v557 = vunpack.c.l.b16 %v230
      %v558 = vunpack.c.h.b16 %v230
      %v559 = vunpack.c.l.b16 %v231
      %v560 = vunpack.c.l.b16 %v232
      %v561 = vunpack.c.h.b16 %v232
      %v562 = vunpack.c.l.b16 %v233
      %v563 = vunpack.c.l.b16 %v234
      %v564 = vunpack.c.h.b16 %v234
      %v565 = vunpack.c.l.b16 %v235
      %v566 = vunpack.c.l.b16 %v236
      %v567 = vunpack.c.h.b16 %v236
      %v568 = vunpack.c.l.b16 %v237
      %v569 = vunpack.c.l.b16 %v238
      %v570 = vunpack.c.h.b16 %v238
      %v571 = vunpack.c.l.b16 %v239
      %v572 = vunpack.c.l.b16 %v240
      %v573 = vunpack.c.h.b16 %v240
      %v574 = vunpack.c.l.b16 %v241
      %v575 = vunpack.c.l.b16 %v242
      %v576 = vunpack.c.h.b16 %v242
      %v577 = vunpack.c.l.b16 %v243
      %v578 = vunpack.c.l.b16 %v244
      %v579 = vunpack.c.h.b16 %v244
      %v580 = vunpack.c.l.b16 %v245
      %v581 = vunpack.c.l.b16 %v246
      %v582 = vunpack.c.h.b16 %v246
      %v583 = vunpack.c.l.b16 %v247
      %v584 = vunpack.c.l.b16 %v248
      %v585 = vunpack.c.h.b16 %v248
      %v586 = vunpack.c.l.b16 %v249
      %v587 = vunpack.c.l.b16 %v250
      %v588 = vunpack.c.h.b16 %v250
      %v589 = vunpack.c.l.b16 %v251
      %v590 = vunpack.c.l.b16 %v252
      %v591 = vunpack.c.h.b16 %v252
      %v592 = vunpack.c.l.b16 %v253
      %v593 = vunpack.c.l.b16 %v254
      %v594 = vunpack.c.h.b16 %v254
      %v595 = vunpack.c.l.b16 %v255
      %v596 = vunpack.c.l.b16 %v256
      %v597 = vunpack.c.h.b16 %v256
      %v598 = vunpack.c.l.b16 %v257
      %v599 = vunpack.c.l.b16 %v258
      %v600 = vunpack.c.h.b16 %v258
      %v601 = vunpack.c.l.b16 %v259
      %v602 = vunpack.c.l.b16 %v260
      %v603 = vunpack.c.h.b16 %v260
      %v604 = vunpack.c.l.b16 %v261
      %v605 = vunpack.c.l.b16 %v262
      %v606 = vunpack.c.h.b16 %v262
      %v607 = vunpack.c.l.b16 %v263
      %v608 = vunpack.c.l.b16 %v264
      %v609 = vunpack.c.h.b16 %v264
      %v610 = vunpack.c.l.b16 %v265
      %v611 = vunpack.c.l.b16 %v266
      %v612 = vunpack.c.h.b16 %v266
      %v613 = vunpack.c.l.b16 %v267
      %v614 = vunpack.c.l.b16 %v268
      %v615 = vunpack.c.h.b16 %v268
      %v616 = vunpack.c.l.b16 %v269
      %v617 = vunpack.c.l.b16 %v270
      %v618 = vunpack.c.h.b16 %v270
      %v619 = vunpack.c.l.b16 %v271
      %v620 = vunpack.c.l.b16 %v272
      %v621 = vunpack.c.h.b16 %v272
      %v622 = vunpack.c.l.b16 %v273
      %v623 = vunpack.c.l.b16 %v274
      %v624 = vunpack.c.h.b16 %v274
      %v625 = vunpack.c.l.b16 %v275
      %v626 = vunpack.c.l.b16 %v276
      %v627 = vunpack.c.h.b16 %v276
      %v628 = vunpack.c.l.b16 %v277
      %v629 = vunpack.c.l.b16 %v278
      %v630 = vunpack.c.h.b16 %v278
      %v631 = vunpack.c.l.b16 %v279
      %v632 = vunpack.c.l.b16 %v280
      %v633 = vunpack.c.h.b16 %v280
      %v634 = vunpack.c.l.b16 %v281
      %v635 = vunpack.c.l.b16 %v282
      %v636 = vunpack.c.h.b16 %v282
      %v637 = vunpack.c.l.b16 %v283
      %v638 = vunpack.c.l.b16 %v284
      %v639 = vunpack.c.h.b16 %v284
      %v640 = vunpack.c.l.b16 %v285
      %v641 = vunpack.c.l.b16 %v286
      %v642 = vunpack.c.h.b16 %v286
      %v643 = vunpack.c.l.b16 %v287
      %v644 = vunpack.c.l.b16 %v288
      %v645 = vunpack.c.h.b16 %v288
      %v646 = vunpack.c.l.b16 %v289
      %v647 = vunpack.c.l.b16 %v290
      %v648 = vunpack.c.h.b16 %v290
      %v649 = vunpack.c.l.b16 %v291
      %v650 = vunpack.c.l.b16 %v292
      %v651 = vunpack.c.h.b16 %v292
      %v652 = vunpack.c.l.b16 %v293
      %v653 = vunpack.c.l.b16 %v294
      %v654 = vunpack.c.h.b16 %v294
      %v655 = vunpack.c.l.b16 %v295
      %v656 = vunpack.c.l.b16 %v296
      %v657 = vunpack.c.h.b16 %v296
      %v658 = vunpack.c.l.b16 %v297
      %v659 = vunpack.c.l.b16 %v298
      %v660 = vunpack.c.h.b16 %v298
      %v661 = vunpack.c.l.b16 %v299
      %v662 = vunpack.c.l.b16 %v300
      %v663 = vunpack.c.h.b16 %v300
      %v664 = vunpack.c.l.b16 %v301
      %v665 = vunpack.c.l.b16 %v302
      %v666 = vunpack.c.h.b16 %v302
      %v667 = vunpack.c.l.b16 %v303
      %v668 = vunpack.c.l.b16 %v304
      %v669 = vunpack.c.h.b16 %v304
      %v670 = vunpack.c.l.b16 %v305
      %v671 = vpack.c.b16 %v482, %v479
      %v672 = vpack.c.b16 %v483, %v480
      %v673 = vpack.c.b16 %v484, %v481
      %v674 = vpack.c.b16 %v488, %v485
      %v675 = vpack.c.b16 %v489, %v486
      %v676 = vpack.c.b16 %v490, %v487
      %v677 = vpack.c.b16 %v494, %v491
      %v678 = vpack.c.b16 %v495, %v492
      %v679 = vpack.c.b16 %v496, %v493
      %v680 = vpack.c.b16 %v500, %v497
      %v681 = vpack.c.b16 %v501, %v498
      %v682 = vpack.c.b16 %v502, %v499
      %v683 = vpack.c.b16 %v506, %v503
      %v684 = vpack.c.b16 %v507, %v504
      %v685 = vpack.c.b16 %v508, %v505
      %v686 = vpack.c.b16 %v512, %v509
      %v687 = vpack.c.b16 %v513, %v510
      %v688 = vpack.c.b16 %v514, %v511
      %v689 = vpack.c.b16 %v518, %v515
      %v690 = vpack.c.b16 %v519, %v516
      %v691 = vpack.c.b16 %v520, %v517
      %v692 = vpack.c.b16 %v524, %v521
      %v693 = vpack.c.b16 %v525, %v522
      %v694 = vpack.c.b16 %v526, %v523
      %v695 = vpack.c.b16 %v530, %v527
      %v696 = vpack.c.b16 %v531, %v528
      %v697 = vpack.c.b16 %v532, %v529
      %v698 = vpack.c.b16 %v536, %v533
      %v699 = vpack.c.b16 %v537, %v534
      %v700 = vpack.c.b16 %v538, %v535
      %v701 = vpack.c.b16 %v542, %v539
      %v702 = vpack.c.b16 %v543, %v540
      %v703 = vpack.c.b16 %v544, %v541
      %v704 = vpack.c.b16 %v548, %v545
      %v705 = vpack.c.b16 %v549, %v546
      %v706 = vpack.c.b16 %v550, %v547
      %v707 = vpack.c.b16 %v554, %v551
      %v708 = vpack.c.b16 %v555, %v552
      %v709 = vpack.c.b16 %v556, %v553
      %v710 = vpack.c.b16 %v560, %v557
      %v711 = vpack.c.b16 %v561, %v558
      %v712 = vpack.c.b16 %v562, %v559
      %v713 = vpack.c.b16 %v566, %v563
      %v714 = vpack.c.b16 %v567, %v564
      %v715 = vpack.c.b16 %v568, %v565
      %v716 = vpack.c.b16 %v572, %v569
      %v717 = vpack.c.b16 %v573, %v570
      %v718 = vpack.c.b16 %v574, %v571
      %v719 = vpack.c.b16 %v578, %v575
      %v720 = vpack.c.b16 %v579, %v576
      %v721 = vpack.c.b16 %v580, %v577
      %v722 = vpack.c.b16 %v584, %v581
      %v723 = vpack.c.b16 %v585, %v582
      %v724 = vpack.c.b16 %v586, %v583
      %v725 = vpack.c.b16 %v590, %v587
      %v726 = vpack.c.b16 %v591, %v588
      %v727 = vpack.c.b16 %v592, %v589
      %v728 = vpack.c.b16 %v596, %v593
      %v729 = vpack.c.b16 %v597, %v594
      %v730 = vpack.c.b16 %v598, %v595
      %v731 = vpack.c.b16 %v602, %v599
      %v732 = vpack.c.b16 %v603, %v600
      %v733 = vpack.c.b16 %v604, %v601
      %v734 = vpack.c.b16 %v608, %v605
      %v735 = vpack.c.b16 %v609, %v606
      %v736 = vpack.c.b16 %v610, %v607
      %v737 = vpack.c.b16 %v614, %v611
      %v738 = vpack.c.b16 %v615, %v612
      %v739 = vpack.c.b16 %v616, %v613
      %v740 = vpack.c.b16 %v620, %v617
      %v741 = vpack.c.b16 %v621, %v618
      %v742 = vpack.c.b16 %v622, %v619
      %v743 = vpack.c.b16 %v626, %v623
      %v744 = vpack.c.b16 %v627, %v624
      %v745 = vpack.c.b16 %v628, %v625
      %v746 = vpack.c.b16 %v632, %v629
      %v747 = vpack.c.b16 %v633, %v630
      %v748 = vpack.c.b16 %v634, %v631
      %v749 = vpack.c.b16 %v638, %v635
      %v750 = vpack.c.b16 %v639, %v636
      %v751 = vpack.c.b16 %v640, %v637
      %v752 = vpack.c.b16 %v644, %v641
      %v753 = vpack.c.b16 %v645, %v642
      %v754 = vpack.c.b16 %v646, %v643
      %v755 = vpack.c.b16 %v650, %v647
      %v756 = vpack.c.b16 %v651, %v648
      %v757 = vpack.c.b16 %v652, %v649
      %v758 = vpack.c.b16 %v656, %v653
      %v759 = vpack.c.b16 %v657, %v654
      %v760 = vpack.c.b16 %v658, %v655
      %v761 = vpack.c.b16 %v662, %v659
      %v762 = vpack.c.b16 %v663, %v660
      %v763 = vpack.c.b16 %v664, %v661
      %v764 = vpack.c.b16 %v668, %v665
      %v765 = vpack.c.b16 %v669, %v666
      %v766 = vpack.c.b16 %v670, %v667
      %v874 = vunpack.c.l.b16 %v306
      %v875 = vunpack.c.l.b16 %v307
      %v876 = vunpack.c.l.b16 %v308
      %v877 = vunpack.c.l.b16 %v309
      %v878 = vunpack.c.l.b16 %v310
      %v879 = vunpack.c.l.b16 %v311
      %v880 = vunpack.c.l.b16 %v312
      %v881 = vunpack.c.l.b16 %v313
      %v882 = vunpack.c.l.b16 %v314
      %v883 = vunpack.c.l.b16 %v315
      %v884 = vunpack.c.l.b16 %v316
      %v885 = vunpack.c.l.b16 %v317
      %v886 = vunpack.c.l.b16 %v318
      %v887 = vunpack.c.l.b16 %v319
      %v888 = vunpack.c.l.b16 %v320
      %v889 = vunpack.c.l.b16 %v321
      %v890 = vunpack.c.l.b16 %v322
      %v891 = vunpack.c.l.b16 %v323
      %v892 = vunpack.c.l.b16 %v324
      %v893 = vunpack.c.l.b16 %v325
      %v894 = vunpack.c.l.b16 %v326
      %v895 = vunpack.c.l.b16 %v327
      %v896 = vunpack.c.l.b16 %v328
      %v897 = vunpack.c.l.b16 %v329
      %v898 = vunpack.c.l.b16 %v330
      %v899 = vunpack.c.l.b16 %v331
      %v900 = vunpack.c.l.b16 %v332
      %v901 = vunpack.c.l.b16 %v333
      %v902 = vunpack.c.l.b16 %v334
      %v903 = vunpack.c.l.b16 %v335
      %v904 = vunpack.c.l.b16 %v336
      %v905 = vunpack.c.l.b16 %v337
      %v906 = vunpack.c.l.b16 %v338
      %v907 = vunpack.c.l.b16 %v339
      %v908 = vunpack.c.l.b16 %v340
      %v909 = vunpack.c.l.b16 %v341
      %v910 = vunpack.c.l.b16 %v342
      %v911 = vunpack.c.l.b16 %v343
      %v912 = vunpack.c.l.b16 %v344
      %v913 = vunpack.c.l.b16 %v345
      %v914 = vunpack.c.l.b16 %v346
      %v915 = vunpack.c.l.b16 %v347
      %v916 = vunpack.c.l.b16 %v348
      %v917 = vpack.c.b16 %v875, %v874
      %v918 = vpack.c.b16 %v877, %v876
      %v919 = vpack.c.b16 %v879, %v878
      %v920 = vpack.c.b16 %v881, %v880
      %v921 = vpack.c.b16 %v883, %v882
      %v922 = vpack.c.b16 %v885, %v884
      %v923 = vpack.c.b16 %v887, %v886
      %v924 = vpack.c.b16 %v889, %v888
      %v925 = vpack.c.b16 %v891, %v890
      %v926 = vpack.c.b16 %v893, %v892
      %v927 = vpack.c.b16 %v895, %v894
      %v928 = vpack.c.b16 %v897, %v896
      %v929 = vpack.c.b16 %v899, %v898
      %v930 = vpack.c.b16 %v901, %v900
      %v931 = vpack.c.b16 %v903, %v902
      %v932 = vpack.c.b16 %v905, %v904
      %v933 = vpack.c.b16 %v907, %v906
      %v934 = vpack.c.b16 %v909, %v908
      %v935 = vpack.c.b16 %v911, %v910
      %v936 = vpack.c.b16 %v913, %v912
      %v937 = vpack.c.b16 %v915, %v914
      %v938 = vpack.c.b16 %v916, %v916
      %vm960 = vcmask 711680
      %v962 = vsel %vm960, %v673, 0
      %v965 = vsel %vm960, %v676, 0
      %v968 = vsel %vm960, %v679, 0
      %v971 = vsel %vm960, %v682, 0
      %v974 = vsel %vm960, %v685, 0
      %v977 = vsel %vm960, %v688, 0
      %v980 = vsel %vm960, %v691, 0
      %v983 = vsel %vm960, %v694, 0
      %v986 = vsel %vm960, %v697, 0
      %v989 = vsel %vm960, %v700, 0
      %v992 = vsel %vm960, %v703, 0
      %v995 = vsel %vm960, %v706, 0
      %v998 = vsel %vm960, %v709, 0
      %v1001 = vsel %vm960, %v712, 0
      %v1004 = vsel %vm960, %v715, 0
      %v1007 = vsel %vm960, %v718, 0
      %v1010 = vsel %vm960, %v721, 0
      %v1013 = vsel %vm960, %v724, 0
      %v1016 = vsel %vm960, %v727, 0
      %v1019 = vsel %vm960, %v730, 0
      %v1022 = vsel %vm960, %v733, 0
      %v1025 = vsel %vm960, %v736, 0
      %v1028 = vsel %vm960, %v739, 0
      %v1031 = vsel %vm960, %v742, 0
      %v1034 = vsel %vm960, %v745, 0
      %v1037 = vsel %vm960, %v748, 0
      %v1040 = vsel %vm960, %v751, 0
      %v1043 = vsel %vm960, %v754, 0
      %v1046 = vsel %vm960, %v757, 0
      %v1049 = vsel %vm960, %v760, 0
      %v1052 = vsel %vm960, %v763, 0
      %v1055 = vsel %vm960, %v766, 0
      %vm1057 = vcmask 1042432
      %vm1058 = vcmask 1043456
      %v1059 = vsel %vm1057, 4294967295, 65535
      %v1060 = vsel %vm1058, %v1059, 0
      %v1062 = vand.u32 %v938, %v1060
      %1064 = vmatpush.bf16.msra.mxu0 %v924
      %1065 = vmatpush.bf16.msra.mxu0 %v923
      %1066 = vmatpush.bf16.msra.mxu0 %v922
      %1067 = vmatpush.bf16.msra.mxu0 %v921
      %1068 = vmatpush.bf16.msra.mxu0 %v920
      %1069 = vmatpush.bf16.msra.mxu0 %v919
      %1070 = vmatpush.bf16.msra.mxu0 %v918
      %1071 = vmatpush.bf16.msra.mxu0 %v917
      %1072 = vmatmul.bf16.gmra.mxu0 %v671
      %v1073 = vpop.f32.mrf.mxu0
      %v1074 = vadd.f32 %v350, %v1073
      %v1075 = vpop.f32.mrf.mxu0
      %v1076 = vadd.f32 %v350, %v1075
      %1077 = vmatmul.bf16.gmra.mxu0 %v674
      %v1078 = vpop.f32.mrf.mxu0
      %v1079 = vadd.f32 %v350, %v1078
      %v1080 = vpop.f32.mrf.mxu0
      %v1081 = vadd.f32 %v350, %v1080
      %1082 = vmatmul.bf16.gmra.mxu0 %v677
      %v1083 = vpop.f32.mrf.mxu0
      %v1084 = vadd.f32 %v350, %v1083
      %v1085 = vpop.f32.mrf.mxu0
      %v1086 = vadd.f32 %v350, %v1085
      %1087 = vmatmul.bf16.gmra.mxu0 %v680
      %v1088 = vpop.f32.mrf.mxu0
      %v1089 = vadd.f32 %v350, %v1088
      %v1090 = vpop.f32.mrf.mxu0
      %v1091 = vadd.f32 %v350, %v1090
      %1092 = vmatmul.bf16.gmra.mxu0 %v683
      %v1093 = vpop.f32.mrf.mxu0
      %v1094 = vadd.f32 %v350, %v1093
      %v1095 = vpop.f32.mrf.mxu0
      %v1096 = vadd.f32 %v350, %v1095
      %1097 = vmatmul.bf16.gmra.mxu0 %v686
      %v1098 = vpop.f32.mrf.mxu0
      %v1099 = vadd.f32 %v350, %v1098
      %v1100 = vpop.f32.mrf.mxu0
      %v1101 = vadd.f32 %v350, %v1100
      %1102 = vmatmul.bf16.gmra.mxu0 %v689
      %v1103 = vpop.f32.mrf.mxu0
      %v1104 = vadd.f32 %v350, %v1103
      %v1105 = vpop.f32.mrf.mxu0
      %v1106 = vadd.f32 %v350, %v1105
      %1107 = vmatmul.bf16.gmra.mxu0 %v692
      %v1108 = vpop.f32.mrf.mxu0
      %v1109 = vadd.f32 %v350, %v1108
      %v1110 = vpop.f32.mrf.mxu0
      %v1111 = vadd.f32 %v350, %v1110
      %1112 = vmatmul.bf16.gmra.mxu0 %v695
      %v1113 = vpop.f32.mrf.mxu0
      %v1114 = vadd.f32 %v350, %v1113
      %v1115 = vpop.f32.mrf.mxu0
      %v1116 = vadd.f32 %v350, %v1115
      %1117 = vmatmul.bf16.gmra.mxu0 %v698
      %v1118 = vpop.f32.mrf.mxu0
      %v1119 = vadd.f32 %v350, %v1118
      %v1120 = vpop.f32.mrf.mxu0
      %v1121 = vadd.f32 %v350, %v1120
      %1122 = vmatmul.bf16.gmra.mxu0 %v701
      %v1123 = vpop.f32.mrf.mxu0
      %v1124 = vadd.f32 %v350, %v1123
      %v1125 = vpop.f32.mrf.mxu0
      %v1126 = vadd.f32 %v350, %v1125
      %1127 = vmatmul.bf16.gmra.mxu0 %v704
      %v1128 = vpop.f32.mrf.mxu0
      %v1129 = vadd.f32 %v350, %v1128
      %v1130 = vpop.f32.mrf.mxu0
      %v1131 = vadd.f32 %v350, %v1130
      %1132 = vmatmul.bf16.gmra.mxu0 %v707
      %v1133 = vpop.f32.mrf.mxu0
      %v1134 = vadd.f32 %v350, %v1133
      %v1135 = vpop.f32.mrf.mxu0
      %v1136 = vadd.f32 %v350, %v1135
      %1137 = vmatmul.bf16.gmra.mxu0 %v710
      %v1138 = vpop.f32.mrf.mxu0
      %v1139 = vadd.f32 %v350, %v1138
      %v1140 = vpop.f32.mrf.mxu0
      %v1141 = vadd.f32 %v350, %v1140
      %1142 = vmatmul.bf16.gmra.mxu0 %v713
      %v1143 = vpop.f32.mrf.mxu0
      %v1144 = vadd.f32 %v350, %v1143
      %v1145 = vpop.f32.mrf.mxu0
      %v1146 = vadd.f32 %v350, %v1145
      %1147 = vmatmul.bf16.gmra.mxu0 %v716
      %v1148 = vpop.f32.mrf.mxu0
      %v1149 = vadd.f32 %v350, %v1148
      %v1150 = vpop.f32.mrf.mxu0
      %v1151 = vadd.f32 %v350, %v1150
      %1152 = vmatmul.bf16.gmra.mxu0 %v719
      %v1153 = vpop.f32.mrf.mxu0
      %v1154 = vadd.f32 %v350, %v1153
      %v1155 = vpop.f32.mrf.mxu0
      %v1156 = vadd.f32 %v350, %v1155
      %1157 = vmatmul.bf16.gmra.mxu0 %v722
      %v1158 = vpop.f32.mrf.mxu0
      %v1159 = vadd.f32 %v350, %v1158
      %v1160 = vpop.f32.mrf.mxu0
      %v1161 = vadd.f32 %v350, %v1160
      %1162 = vmatmul.bf16.gmra.mxu0 %v725
      %v1163 = vpop.f32.mrf.mxu0
      %v1164 = vadd.f32 %v350, %v1163
      %v1165 = vpop.f32.mrf.mxu0
      %v1166 = vadd.f32 %v350, %v1165
      %1167 = vmatmul.bf16.gmra.mxu0 %v728
      %v1168 = vpop.f32.mrf.mxu0
      %v1169 = vadd.f32 %v350, %v1168
      %v1170 = vpop.f32.mrf.mxu0
      %v1171 = vadd.f32 %v350, %v1170
      %1172 = vmatmul.bf16.gmra.mxu0 %v731
      %v1173 = vpop.f32.mrf.mxu0
      %v1174 = vadd.f32 %v350, %v1173
      %v1175 = vpop.f32.mrf.mxu0
      %v1176 = vadd.f32 %v350, %v1175
      %1177 = vmatmul.bf16.gmra.mxu0 %v734
      %v1178 = vpop.f32.mrf.mxu0
      %v1179 = vadd.f32 %v350, %v1178
      %v1180 = vpop.f32.mrf.mxu0
      %v1181 = vadd.f32 %v350, %v1180
      %1182 = vmatmul.bf16.gmra.mxu0 %v737
      %v1183 = vpop.f32.mrf.mxu0
      %v1184 = vadd.f32 %v350, %v1183
      %v1185 = vpop.f32.mrf.mxu0
      %v1186 = vadd.f32 %v350, %v1185
      %1187 = vmatmul.bf16.gmra.mxu0 %v740
      %v1188 = vpop.f32.mrf.mxu0
      %v1189 = vadd.f32 %v350, %v1188
      %v1190 = vpop.f32.mrf.mxu0
      %v1191 = vadd.f32 %v350, %v1190
      %1192 = vmatmul.bf16.gmra.mxu0 %v743
      %v1193 = vpop.f32.mrf.mxu0
      %v1194 = vadd.f32 %v350, %v1193
      %v1195 = vpop.f32.mrf.mxu0
      %v1196 = vadd.f32 %v350, %v1195
      %1197 = vmatmul.bf16.gmra.mxu0 %v746
      %v1198 = vpop.f32.mrf.mxu0
      %v1199 = vadd.f32 %v350, %v1198
      %v1200 = vpop.f32.mrf.mxu0
      %v1201 = vadd.f32 %v350, %v1200
      %1202 = vmatmul.bf16.gmra.mxu0 %v749
      %v1203 = vpop.f32.mrf.mxu0
      %v1204 = vadd.f32 %v350, %v1203
      %v1205 = vpop.f32.mrf.mxu0
      %v1206 = vadd.f32 %v350, %v1205
      %1207 = vmatmul.bf16.gmra.mxu0 %v752
      %v1208 = vpop.f32.mrf.mxu0
      %v1209 = vadd.f32 %v350, %v1208
      %v1210 = vpop.f32.mrf.mxu0
      %v1211 = vadd.f32 %v350, %v1210
      %1212 = vmatmul.bf16.gmra.mxu0 %v755
      %v1213 = vpop.f32.mrf.mxu0
      %v1214 = vadd.f32 %v350, %v1213
      %v1215 = vpop.f32.mrf.mxu0
      %v1216 = vadd.f32 %v350, %v1215
      %1217 = vmatmul.bf16.gmra.mxu0 %v758
      %v1218 = vpop.f32.mrf.mxu0
      %v1219 = vadd.f32 %v350, %v1218
      %v1220 = vpop.f32.mrf.mxu0
      %v1221 = vadd.f32 %v350, %v1220
      %1222 = vmatmul.bf16.gmra.mxu0 %v761
      %v1223 = vpop.f32.mrf.mxu0
      %v1224 = vadd.f32 %v350, %v1223
      %v1225 = vpop.f32.mrf.mxu0
      %v1226 = vadd.f32 %v350, %v1225
      %1227 = vmatmul.bf16.gmra.mxu0 %v764
      %v1228 = vpop.f32.mrf.mxu0
      %v1229 = vadd.f32 %v350, %v1228
      %v1230 = vpop.f32.mrf.mxu0
      %v1231 = vadd.f32 %v350, %v1230
      %1232 = vdwg.mxu0
      %1233 = vmatpush.bf16.msra.mxu0 %v932
      %1234 = vmatpush.bf16.msra.mxu0 %v931
      %1235 = vmatpush.bf16.msra.mxu0 %v930
      %1236 = vmatpush.bf16.msra.mxu0 %v929
      %1237 = vmatpush.bf16.msra.mxu0 %v928
      %1238 = vmatpush.bf16.msra.mxu0 %v927
      %1239 = vmatpush.bf16.msra.mxu0 %v926
      %1240 = vmatpush.bf16.msra.mxu0 %v925
      %1241 = vmatmul.bf16.gmra.mxu0 %v672
      %v1242 = vpop.f32.mrf.mxu0
      %v1243 = vadd.f32 %v1074, %v1242
      %v1244 = vpop.f32.mrf.mxu0
      %v1245 = vadd.f32 %v1076, %v1244
      %1246 = vmatmul.bf16.gmra.mxu0 %v675
      %v1247 = vpop.f32.mrf.mxu0
      %v1248 = vadd.f32 %v1079, %v1247
      %v1249 = vpop.f32.mrf.mxu0
      %v1250 = vadd.f32 %v1081, %v1249
      %1251 = vmatmul.bf16.gmra.mxu0 %v678
      %v1252 = vpop.f32.mrf.mxu0
      %v1253 = vadd.f32 %v1084, %v1252
      %v1254 = vpop.f32.mrf.mxu0
      %v1255 = vadd.f32 %v1086, %v1254
      %1256 = vmatmul.bf16.gmra.mxu0 %v681
      %v1257 = vpop.f32.mrf.mxu0
      %v1258 = vadd.f32 %v1089, %v1257
      %v1259 = vpop.f32.mrf.mxu0
      %v1260 = vadd.f32 %v1091, %v1259
      %1261 = vmatmul.bf16.gmra.mxu0 %v684
      %v1262 = vpop.f32.mrf.mxu0
      %v1263 = vadd.f32 %v1094, %v1262
      %v1264 = vpop.f32.mrf.mxu0
      %v1265 = vadd.f32 %v1096, %v1264
      %1266 = vmatmul.bf16.gmra.mxu0 %v687
      %v1267 = vpop.f32.mrf.mxu0
      %v1268 = vadd.f32 %v1099, %v1267
      %v1269 = vpop.f32.mrf.mxu0
      %v1270 = vadd.f32 %v1101, %v1269
      %1271 = vmatmul.bf16.gmra.mxu0 %v690
      %v1272 = vpop.f32.mrf.mxu0
      %v1273 = vadd.f32 %v1104, %v1272
      %v1274 = vpop.f32.mrf.mxu0
      %v1275 = vadd.f32 %v1106, %v1274
      %1276 = vmatmul.bf16.gmra.mxu0 %v693
      %v1277 = vpop.f32.mrf.mxu0
      %v1278 = vadd.f32 %v1109, %v1277
      %v1279 = vpop.f32.mrf.mxu0
      %v1280 = vadd.f32 %v1111, %v1279
      %1281 = vmatmul.bf16.gmra.mxu0 %v696
      %v1282 = vpop.f32.mrf.mxu0
      %v1283 = vadd.f32 %v1114, %v1282
      %v1284 = vpop.f32.mrf.mxu0
      %v1285 = vadd.f32 %v1116, %v1284
      %1286 = vmatmul.bf16.gmra.mxu0 %v699
      %v1287 = vpop.f32.mrf.mxu0
      %v1288 = vadd.f32 %v1119, %v1287
      %v1289 = vpop.f32.mrf.mxu0
      %v1290 = vadd.f32 %v1121, %v1289
      %1291 = vmatmul.bf16.gmra.mxu0 %v702
      %v1292 = vpop.f32.mrf.mxu0
      %v1293 = vadd.f32 %v1124, %v1292
      %v1294 = vpop.f32.mrf.mxu0
      %v1295 = vadd.f32 %v1126, %v1294
      %1296 = vmatmul.bf16.gmra.mxu0 %v705
      %v1297 = vpop.f32.mrf.mxu0
      %v1298 = vadd.f32 %v1129, %v1297
      %v1299 = vpop.f32.mrf.mxu0
      %v1300 = vadd.f32 %v1131, %v1299
      %1301 = vmatmul.bf16.gmra.mxu0 %v708
      %v1302 = vpop.f32.mrf.mxu0
      %v1303 = vadd.f32 %v1134, %v1302
      %v1304 = vpop.f32.mrf.mxu0
      %v1305 = vadd.f32 %v1136, %v1304
      %1306 = vmatmul.bf16.gmra.mxu0 %v711
      %v1307 = vpop.f32.mrf.mxu0
      %v1308 = vadd.f32 %v1139, %v1307
      %v1309 = vpop.f32.mrf.mxu0
      %v1310 = vadd.f32 %v1141, %v1309
      %1311 = vmatmul.bf16.gmra.mxu0 %v714
      %v1312 = vpop.f32.mrf.mxu0
      %v1313 = vadd.f32 %v1144, %v1312
      %v1314 = vpop.f32.mrf.mxu0
      %v1315 = vadd.f32 %v1146, %v1314
      %1316 = vmatmul.bf16.gmra.mxu0 %v717
      %v1317 = vpop.f32.mrf.mxu0
      %v1318 = vadd.f32 %v1149, %v1317
      %v1319 = vpop.f32.mrf.mxu0
      %v1320 = vadd.f32 %v1151, %v1319
      %1321 = vmatmul.bf16.gmra.mxu0 %v720
      %v1322 = vpop.f32.mrf.mxu0
      %v1323 = vadd.f32 %v1154, %v1322
      %v1324 = vpop.f32.mrf.mxu0
      %v1325 = vadd.f32 %v1156, %v1324
      %1326 = vmatmul.bf16.gmra.mxu0 %v723
      %v1327 = vpop.f32.mrf.mxu0
      %v1328 = vadd.f32 %v1159, %v1327
      %v1329 = vpop.f32.mrf.mxu0
      %v1330 = vadd.f32 %v1161, %v1329
      %1331 = vmatmul.bf16.gmra.mxu0 %v726
      %v1332 = vpop.f32.mrf.mxu0
      %v1333 = vadd.f32 %v1164, %v1332
      %v1334 = vpop.f32.mrf.mxu0
      %v1335 = vadd.f32 %v1166, %v1334
      %1336 = vmatmul.bf16.gmra.mxu0 %v729
      %v1337 = vpop.f32.mrf.mxu0
      %v1338 = vadd.f32 %v1169, %v1337
      %v1339 = vpop.f32.mrf.mxu0
      %v1340 = vadd.f32 %v1171, %v1339
      %1341 = vmatmul.bf16.gmra.mxu0 %v732
      %v1342 = vpop.f32.mrf.mxu0
      %v1343 = vadd.f32 %v1174, %v1342
      %v1344 = vpop.f32.mrf.mxu0
      %v1345 = vadd.f32 %v1176, %v1344
      %1346 = vmatmul.bf16.gmra.mxu0 %v735
      %v1347 = vpop.f32.mrf.mxu0
      %v1348 = vadd.f32 %v1179, %v1347
      %v1349 = vpop.f32.mrf.mxu0
      %v1350 = vadd.f32 %v1181, %v1349
      %1351 = vmatmul.bf16.gmra.mxu0 %v738
      %v1352 = vpop.f32.mrf.mxu0
      %v1353 = vadd.f32 %v1184, %v1352
      %v1354 = vpop.f32.mrf.mxu0
      %v1355 = vadd.f32 %v1186, %v1354
      %1356 = vmatmul.bf16.gmra.mxu0 %v741
      %v1357 = vpop.f32.mrf.mxu0
      %v1358 = vadd.f32 %v1189, %v1357
      %v1359 = vpop.f32.mrf.mxu0
      %v1360 = vadd.f32 %v1191, %v1359
      %1361 = vmatmul.bf16.gmra.mxu0 %v744
      %v1362 = vpop.f32.mrf.mxu0
      %v1363 = vadd.f32 %v1194, %v1362
      %v1364 = vpop.f32.mrf.mxu0
      %v1365 = vadd.f32 %v1196, %v1364
      %1366 = vmatmul.bf16.gmra.mxu0 %v747
      %v1367 = vpop.f32.mrf.mxu0
      %v1368 = vadd.f32 %v1199, %v1367
      %v1369 = vpop.f32.mrf.mxu0
      %v1370 = vadd.f32 %v1201, %v1369
      %1371 = vmatmul.bf16.gmra.mxu0 %v750
      %v1372 = vpop.f32.mrf.mxu0
      %v1373 = vadd.f32 %v1204, %v1372
      %v1374 = vpop.f32.mrf.mxu0
      %v1375 = vadd.f32 %v1206, %v1374
      %1376 = vmatmul.bf16.gmra.mxu0 %v753
      %v1377 = vpop.f32.mrf.mxu0
      %v1378 = vadd.f32 %v1209, %v1377
      %v1379 = vpop.f32.mrf.mxu0
      %v1380 = vadd.f32 %v1211, %v1379
      %1381 = vmatmul.bf16.gmra.mxu0 %v756
      %v1382 = vpop.f32.mrf.mxu0
      %v1383 = vadd.f32 %v1214, %v1382
      %v1384 = vpop.f32.mrf.mxu0
      %v1385 = vadd.f32 %v1216, %v1384
      %1386 = vmatmul.bf16.gmra.mxu0 %v759
      %v1387 = vpop.f32.mrf.mxu0
      %v1388 = vadd.f32 %v1219, %v1387
      %v1389 = vpop.f32.mrf.mxu0
      %v1390 = vadd.f32 %v1221, %v1389
      %1391 = vmatmul.bf16.gmra.mxu0 %v762
      %v1392 = vpop.f32.mrf.mxu0
      %v1393 = vadd.f32 %v1224, %v1392
      %v1394 = vpop.f32.mrf.mxu0
      %v1395 = vadd.f32 %v1226, %v1394
      %1396 = vmatmul.bf16.gmra.mxu0 %v765
      %v1397 = vpop.f32.mrf.mxu0
      %v1398 = vadd.f32 %v1229, %v1397
      %v1399 = vpop.f32.mrf.mxu0
      %v1400 = vadd.f32 %v1231, %v1399
      %1401 = vdwg.mxu0
      %1402 = vmatpush.bf16.msra.mxu0 0
      %1403 = vmatpush.bf16.msra.mxu0 0
      %1404 = vmatpush.bf16.msra.mxu0 %v1062
      %1405 = vmatpush.bf16.msra.mxu0 %v937
      %1406 = vmatpush.bf16.msra.mxu0 %v936
      %1407 = vmatpush.bf16.msra.mxu0 %v935
      %1408 = vmatpush.bf16.msra.mxu0 %v934
      %1409 = vmatpush.bf16.msra.mxu0 %v933
      %1410 = vmatmul.bf16.gmra.mxu0 %v962
      %v1411 = vpop.f32.mrf.mxu0
      %v1412 = vadd.f32 %v1243, %v1411
      %v1413 = vpop.f32.mrf.mxu0
      %v1414 = vadd.f32 %v1245, %v1413
      %1415 = vmatmul.bf16.gmra.mxu0 %v965
      %v1416 = vpop.f32.mrf.mxu0
      %v1417 = vadd.f32 %v1248, %v1416
      %v1418 = vpop.f32.mrf.mxu0
      %v1419 = vadd.f32 %v1250, %v1418
      %1420 = vmatmul.bf16.gmra.mxu0 %v968
      %v1421 = vpop.f32.mrf.mxu0
      %v1422 = vadd.f32 %v1253, %v1421
      %v1423 = vpop.f32.mrf.mxu0
      %v1424 = vadd.f32 %v1255, %v1423
      %1425 = vmatmul.bf16.gmra.mxu0 %v971
      %v1426 = vpop.f32.mrf.mxu0
      %v1427 = vadd.f32 %v1258, %v1426
      %v1428 = vpop.f32.mrf.mxu0
      %v1429 = vadd.f32 %v1260, %v1428
      %1430 = vmatmul.bf16.gmra.mxu0 %v974
      %v1431 = vpop.f32.mrf.mxu0
      %v1432 = vadd.f32 %v1263, %v1431
      %v1433 = vpop.f32.mrf.mxu0
      %v1434 = vadd.f32 %v1265, %v1433
      %1435 = vmatmul.bf16.gmra.mxu0 %v977
      %v1436 = vpop.f32.mrf.mxu0
      %v1437 = vadd.f32 %v1268, %v1436
      %v1438 = vpop.f32.mrf.mxu0
      %v1439 = vadd.f32 %v1270, %v1438
      %1440 = vmatmul.bf16.gmra.mxu0 %v980
      %v1441 = vpop.f32.mrf.mxu0
      %v1442 = vadd.f32 %v1273, %v1441
      %v1443 = vpop.f32.mrf.mxu0
      %v1444 = vadd.f32 %v1275, %v1443
      %1445 = vmatmul.bf16.gmra.mxu0 %v983
      %v1446 = vpop.f32.mrf.mxu0
      %v1447 = vadd.f32 %v1278, %v1446
      %v1448 = vpop.f32.mrf.mxu0
      %v1449 = vadd.f32 %v1280, %v1448
      %1450 = vmatmul.bf16.gmra.mxu0 %v986
      %v1451 = vpop.f32.mrf.mxu0
      %v1452 = vadd.f32 %v1283, %v1451
      %v1453 = vpop.f32.mrf.mxu0
      %v1454 = vadd.f32 %v1285, %v1453
      %1455 = vmatmul.bf16.gmra.mxu0 %v989
      %v1456 = vpop.f32.mrf.mxu0
      %v1457 = vadd.f32 %v1288, %v1456
      %v1458 = vpop.f32.mrf.mxu0
      %v1459 = vadd.f32 %v1290, %v1458
      %1460 = vmatmul.bf16.gmra.mxu0 %v992
      %v1461 = vpop.f32.mrf.mxu0
      %v1462 = vadd.f32 %v1293, %v1461
      %v1463 = vpop.f32.mrf.mxu0
      %v1464 = vadd.f32 %v1295, %v1463
      %1465 = vmatmul.bf16.gmra.mxu0 %v995
      %v1466 = vpop.f32.mrf.mxu0
      %v1467 = vadd.f32 %v1298, %v1466
      %v1468 = vpop.f32.mrf.mxu0
      %v1469 = vadd.f32 %v1300, %v1468
      %1470 = vmatmul.bf16.gmra.mxu0 %v998
      %v1471 = vpop.f32.mrf.mxu0
      %v1472 = vadd.f32 %v1303, %v1471
      %v1473 = vpop.f32.mrf.mxu0
      %v1474 = vadd.f32 %v1305, %v1473
      %1475 = vmatmul.bf16.gmra.mxu0 %v1001
      %v1476 = vpop.f32.mrf.mxu0
      %v1477 = vadd.f32 %v1308, %v1476
      %v1478 = vpop.f32.mrf.mxu0
      %v1479 = vadd.f32 %v1310, %v1478
      %1480 = vmatmul.bf16.gmra.mxu0 %v1004
      %v1481 = vpop.f32.mrf.mxu0
      %v1482 = vadd.f32 %v1313, %v1481
      %v1483 = vpop.f32.mrf.mxu0
      %v1484 = vadd.f32 %v1315, %v1483
      %1485 = vmatmul.bf16.gmra.mxu0 %v1007
      %v1486 = vpop.f32.mrf.mxu0
      %v1487 = vadd.f32 %v1318, %v1486
      %v1488 = vpop.f32.mrf.mxu0
      %v1489 = vadd.f32 %v1320, %v1488
      %1490 = vmatmul.bf16.gmra.mxu0 %v1010
      %v1491 = vpop.f32.mrf.mxu0
      %v1492 = vadd.f32 %v1323, %v1491
      %v1493 = vpop.f32.mrf.mxu0
      %v1494 = vadd.f32 %v1325, %v1493
      %1495 = vmatmul.bf16.gmra.mxu0 %v1013
      %v1496 = vpop.f32.mrf.mxu0
      %v1497 = vadd.f32 %v1328, %v1496
      %v1498 = vpop.f32.mrf.mxu0
      %v1499 = vadd.f32 %v1330, %v1498
      %1500 = vmatmul.bf16.gmra.mxu0 %v1016
      %v1501 = vpop.f32.mrf.mxu0
      %v1502 = vadd.f32 %v1333, %v1501
      %v1503 = vpop.f32.mrf.mxu0
      %v1504 = vadd.f32 %v1335, %v1503
      %1505 = vmatmul.bf16.gmra.mxu0 %v1019
      %v1506 = vpop.f32.mrf.mxu0
      %v1507 = vadd.f32 %v1338, %v1506
      %v1508 = vpop.f32.mrf.mxu0
      %v1509 = vadd.f32 %v1340, %v1508
      %1510 = vmatmul.bf16.gmra.mxu0 %v1022
      %v1511 = vpop.f32.mrf.mxu0
      %v1512 = vadd.f32 %v1343, %v1511
      %v1513 = vpop.f32.mrf.mxu0
      %v1514 = vadd.f32 %v1345, %v1513
      %1515 = vmatmul.bf16.gmra.mxu0 %v1025
      %v1516 = vpop.f32.mrf.mxu0
      %v1517 = vadd.f32 %v1348, %v1516
      %v1518 = vpop.f32.mrf.mxu0
      %v1519 = vadd.f32 %v1350, %v1518
      %1520 = vmatmul.bf16.gmra.mxu0 %v1028
      %v1521 = vpop.f32.mrf.mxu0
      %v1522 = vadd.f32 %v1353, %v1521
      %v1523 = vpop.f32.mrf.mxu0
      %v1524 = vadd.f32 %v1355, %v1523
      %1525 = vmatmul.bf16.gmra.mxu0 %v1031
      %v1526 = vpop.f32.mrf.mxu0
      %v1527 = vadd.f32 %v1358, %v1526
      %v1528 = vpop.f32.mrf.mxu0
      %v1529 = vadd.f32 %v1360, %v1528
      %1530 = vmatmul.bf16.gmra.mxu0 %v1034
      %v1531 = vpop.f32.mrf.mxu0
      %v1532 = vadd.f32 %v1363, %v1531
      %v1533 = vpop.f32.mrf.mxu0
      %v1534 = vadd.f32 %v1365, %v1533
      %1535 = vmatmul.bf16.gmra.mxu0 %v1037
      %v1536 = vpop.f32.mrf.mxu0
      %v1537 = vadd.f32 %v1368, %v1536
      %v1538 = vpop.f32.mrf.mxu0
      %v1539 = vadd.f32 %v1370, %v1538
      %1540 = vmatmul.bf16.gmra.mxu0 %v1040
      %v1541 = vpop.f32.mrf.mxu0
      %v1542 = vadd.f32 %v1373, %v1541
      %v1543 = vpop.f32.mrf.mxu0
      %v1544 = vadd.f32 %v1375, %v1543
      %1545 = vmatmul.bf16.gmra.mxu0 %v1043
      %v1546 = vpop.f32.mrf.mxu0
      %v1547 = vadd.f32 %v1378, %v1546
      %v1548 = vpop.f32.mrf.mxu0
      %v1549 = vadd.f32 %v1380, %v1548
      %1550 = vmatmul.bf16.gmra.mxu0 %v1046
      %v1551 = vpop.f32.mrf.mxu0
      %v1552 = vadd.f32 %v1383, %v1551
      %v1553 = vpop.f32.mrf.mxu0
      %v1554 = vadd.f32 %v1385, %v1553
      %1555 = vmatmul.bf16.gmra.mxu0 %v1049
      %v1556 = vpop.f32.mrf.mxu0
      %v1557 = vadd.f32 %v1388, %v1556
      %v1558 = vpop.f32.mrf.mxu0
      %v1559 = vadd.f32 %v1390, %v1558
      %1560 = vmatmul.bf16.gmra.mxu0 %v1052
      %v1561 = vpop.f32.mrf.mxu0
      %v1562 = vadd.f32 %v1393, %v1561
      %v1563 = vpop.f32.mrf.mxu0
      %v1564 = vadd.f32 %v1395, %v1563
      %1565 = vmatmul.bf16.gmra.mxu0 %v1055
      %v1566 = vpop.f32.mrf.mxu0
      %v1567 = vadd.f32 %v1398, %v1566
      %v1568 = vpop.f32.mrf.mxu0
      %v1569 = vadd.f32 %v1400, %v1568
      %1570 = vdwg.mxu0
      %v1571 = vmax.f32 %v1412, 0.0
      %v1572 = vmax.f32 %v1414, 0.0
      %v1573 = vmax.f32 %v1417, 0.0
      %v1574 = vmax.f32 %v1419, 0.0
      %v1575 = vmax.f32 %v1422, 0.0
      %v1576 = vmax.f32 %v1424, 0.0
      %v1577 = vmax.f32 %v1427, 0.0
      %v1578 = vmax.f32 %v1429, 0.0
      %v1579 = vmax.f32 %v1432, 0.0
      %v1580 = vmax.f32 %v1434, 0.0
      %v1581 = vmax.f32 %v1437, 0.0
      %v1582 = vmax.f32 %v1439, 0.0
      %v1583 = vmax.f32 %v1442, 0.0
      %v1584 = vmax.f32 %v1444, 0.0
      %v1585 = vmax.f32 %v1447, 0.0
      %v1586 = vmax.f32 %v1449, 0.0
      %v1587 = vmax.f32 %v1452, 0.0
      %v1588 = vmax.f32 %v1454, 0.0
      %v1589 = vmax.f32 %v1457, 0.0
      %v1590 = vmax.f32 %v1459, 0.0
      %v1591 = vmax.f32 %v1462, 0.0
      %v1592 = vmax.f32 %v1464, 0.0
      %v1593 = vmax.f32 %v1467, 0.0
      %v1594 = vmax.f32 %v1469, 0.0
      %v1595 = vmax.f32 %v1472, 0.0
      %v1596 = vmax.f32 %v1474, 0.0
      %v1597 = vmax.f32 %v1477, 0.0
      %v1598 = vmax.f32 %v1479, 0.0
      %v1599 = vmax.f32 %v1482, 0.0
      %v1600 = vmax.f32 %v1484, 0.0
      %v1601 = vmax.f32 %v1487, 0.0
      %v1602 = vmax.f32 %v1489, 0.0
      %v1603 = vmax.f32 %v1492, 0.0
      %v1604 = vmax.f32 %v1494, 0.0
      %v1605 = vmax.f32 %v1497, 0.0
      %v1606 = vmax.f32 %v1499, 0.0
      %v1607 = vmax.f32 %v1502, 0.0
      %v1608 = vmax.f32 %v1504, 0.0
      %v1609 = vmax.f32 %v1507, 0.0
      %v1610 = vmax.f32 %v1509, 0.0
      %v1611 = vmax.f32 %v1512, 0.0
      %v1612 = vmax.f32 %v1514, 0.0
      %v1613 = vmax.f32 %v1517, 0.0
      %v1614 = vmax.f32 %v1519, 0.0
      %v1615 = vmax.f32 %v1522, 0.0
      %v1616 = vmax.f32 %v1524, 0.0
      %v1617 = vmax.f32 %v1527, 0.0
      %v1618 = vmax.f32 %v1529, 0.0
      %v1619 = vmax.f32 %v1532, 0.0
      %v1620 = vmax.f32 %v1534, 0.0
      %v1621 = vmax.f32 %v1537, 0.0
      %v1622 = vmax.f32 %v1539, 0.0
      %v1623 = vmax.f32 %v1542, 0.0
      %v1624 = vmax.f32 %v1544, 0.0
      %v1625 = vmax.f32 %v1547, 0.0
      %v1626 = vmax.f32 %v1549, 0.0
      %v1627 = vmax.f32 %v1552, 0.0
      %v1628 = vmax.f32 %v1554, 0.0
      %v1629 = vmax.f32 %v1557, 0.0
      %v1630 = vmax.f32 %v1559, 0.0
      %v1631 = vmax.f32 %v1562, 0.0
      %v1632 = vmax.f32 %v1564, 0.0
      %v1633 = vmax.f32 %v1567, 0.0
      %v1634 = vmax.f32 %v1569, 0.0
      %v1635 = vpack.c.bf16 %v1571, %v1571
      %v1636 = vpack.c.bf16 %v1572, %v1572
      %v1637 = vpack.c.bf16 %v1573, %v1573
      %v1638 = vpack.c.bf16 %v1574, %v1574
      %v1639 = vpack.c.bf16 %v1575, %v1575
      %v1640 = vpack.c.bf16 %v1576, %v1576
      %v1641 = vpack.c.bf16 %v1577, %v1577
      %v1642 = vpack.c.bf16 %v1578, %v1578
      %v1643 = vpack.c.bf16 %v1579, %v1579
      %v1644 = vpack.c.bf16 %v1580, %v1580
      %v1645 = vpack.c.bf16 %v1581, %v1581
      %v1646 = vpack.c.bf16 %v1582, %v1582
      %v1647 = vpack.c.bf16 %v1583, %v1583
      %v1648 = vpack.c.bf16 %v1584, %v1584
      %v1649 = vpack.c.bf16 %v1585, %v1585
      %v1650 = vpack.c.bf16 %v1586, %v1586
      %v1651 = vpack.c.bf16 %v1587, %v1587
      %v1652 = vpack.c.bf16 %v1588, %v1588
      %v1653 = vpack.c.bf16 %v1589, %v1589
      %v1654 = vpack.c.bf16 %v1590, %v1590
      %v1655 = vpack.c.bf16 %v1591, %v1591
      %v1656 = vpack.c.bf16 %v1592, %v1592
      %v1657 = vpack.c.bf16 %v1593, %v1593
      %v1658 = vpack.c.bf16 %v1594, %v1594
      %v1659 = vpack.c.bf16 %v1595, %v1595
      %v1660 = vpack.c.bf16 %v1596, %v1596
      %v1661 = vpack.c.bf16 %v1597, %v1597
      %v1662 = vpack.c.bf16 %v1598, %v1598
      %v1663 = vpack.c.bf16 %v1599, %v1599
      %v1664 = vpack.c.bf16 %v1600, %v1600
      %v1665 = vpack.c.bf16 %v1601, %v1601
      %v1666 = vpack.c.bf16 %v1602, %v1602
      %v1667 = vpack.c.bf16 %v1603, %v1603
      %v1668 = vpack.c.bf16 %v1604, %v1604
      %v1669 = vpack.c.bf16 %v1605, %v1605
      %v1670 = vpack.c.bf16 %v1606, %v1606
      %v1671 = vpack.c.bf16 %v1607, %v1607
      %v1672 = vpack.c.bf16 %v1608, %v1608
      %v1673 = vpack.c.bf16 %v1609, %v1609
      %v1674 = vpack.c.bf16 %v1610, %v1610
      %v1675 = vpack.c.bf16 %v1611, %v1611
      %v1676 = vpack.c.bf16 %v1612, %v1612
      %v1677 = vpack.c.bf16 %v1613, %v1613
      %v1678 = vpack.c.bf16 %v1614, %v1614
      %v1679 = vpack.c.bf16 %v1615, %v1615
      %v1680 = vpack.c.bf16 %v1616, %v1616
      %v1681 = vpack.c.bf16 %v1617, %v1617
      %v1682 = vpack.c.bf16 %v1618, %v1618
      %v1683 = vpack.c.bf16 %v1619, %v1619
      %v1684 = vpack.c.bf16 %v1620, %v1620
      %v1685 = vpack.c.bf16 %v1621, %v1621
      %v1686 = vpack.c.bf16 %v1622, %v1622
      %v1687 = vpack.c.bf16 %v1623, %v1623
      %v1688 = vpack.c.bf16 %v1624, %v1624
      %v1689 = vpack.c.bf16 %v1625, %v1625
      %v1690 = vpack.c.bf16 %v1626, %v1626
      %v1691 = vpack.c.bf16 %v1627, %v1627
      %v1692 = vpack.c.bf16 %v1628, %v1628
      %v1693 = vpack.c.bf16 %v1629, %v1629
      %v1694 = vpack.c.bf16 %v1630, %v1630
      %v1695 = vpack.c.bf16 %v1631, %v1631
      %v1696 = vpack.c.bf16 %v1632, %v1632
      %v1697 = vpack.c.bf16 %v1633, %v1633
      %v1698 = vpack.c.bf16 %v1634, %v1634
      %vm1699 = vcmask 519168
      %1700 = vst.msk [vmem:[%s175] sm:$0xf] %vm1699, %v1635
      %1701 = vst.msk [vmem:[%s175 + $0x4] sm:$0xf] %vm1699, %v1636
      %1702 = vst.msk [vmem:[%s175 + $0x8] sm:$0xf] %vm1699, %v1637
      %1703 = vst.msk [vmem:[%s175 + $0xc] sm:$0xf] %vm1699, %v1638
      %1704 = vst.msk [vmem:[%s175 + $0x10] sm:$0xf] %vm1699, %v1639
      %1705 = vst.msk [vmem:[%s175 + $0x14] sm:$0xf] %vm1699, %v1640
      %1706 = vst.msk [vmem:[%s175 + $0x18] sm:$0xf] %vm1699, %v1641
      %1707 = vst.msk [vmem:[%s175 + $0x1c] sm:$0xf] %vm1699, %v1642
      %1708 = vst.msk [vmem:[%s175 + $0x20] sm:$0xf] %vm1699, %v1643
      %1709 = vst.msk [vmem:[%s175 + $0x24] sm:$0xf] %vm1699, %v1644
      %1710 = vst.msk [vmem:[%s175 + $0x28] sm:$0xf] %vm1699, %v1645
      %1711 = vst.msk [vmem:[%s175 + $0x2c] sm:$0xf] %vm1699, %v1646
      %1712 = vst.msk [vmem:[%s175 + $0x30] sm:$0xf] %vm1699, %v1647
      %1713 = vst.msk [vmem:[%s175 + $0x34] sm:$0xf] %vm1699, %v1648
      %1714 = vst.msk [vmem:[%s175 + $0x38] sm:$0xf] %vm1699, %v1649
      %1715 = vst.msk [vmem:[%s175 + $0x3c] sm:$0xf] %vm1699, %v1650
      %1716 = vst.msk [vmem:[%s175 + $0x40] sm:$0xf] %vm1699, %v1651
      %1717 = vst.msk [vmem:[%s175 + $0x44] sm:$0xf] %vm1699, %v1652
      %1718 = vst.msk [vmem:[%s175 + $0x48] sm:$0xf] %vm1699, %v1653
      %1719 = vst.msk [vmem:[%s175 + $0x4c] sm:$0xf] %vm1699, %v1654
      %1720 = vst.msk [vmem:[%s175 + $0x50] sm:$0xf] %vm1699, %v1655
      %1721 = vst.msk [vmem:[%s175 + $0x54] sm:$0xf] %vm1699, %v1656
      %1722 = vst.msk [vmem:[%s175 + $0x58] sm:$0xf] %vm1699, %v1657
      %1723 = vst.msk [vmem:[%s175 + $0x5c] sm:$0xf] %vm1699, %v1658
      %1724 = vst.msk [vmem:[%s175 + $0x60] sm:$0xf] %vm1699, %v1659
      %1725 = vst.msk [vmem:[%s175 + $0x64] sm:$0xf] %vm1699, %v1660
      %1726 = vst.msk [vmem:[%s175 + $0x68] sm:$0xf] %vm1699, %v1661
      %1727 = vst.msk [vmem:[%s175 + $0x6c] sm:$0xf] %vm1699, %v1662
      %1728 = vst.msk [vmem:[%s175 + $0x70] sm:$0xf] %vm1699, %v1663
      %1729 = vst.msk [vmem:[%s175 + $0x74] sm:$0xf] %vm1699, %v1664
      %1730 = vst.msk [vmem:[%s175 + $0x78] sm:$0xf] %vm1699, %v1665
      %1731 = vst.msk [vmem:[%s175 + $0x7c] sm:$0xf] %vm1699, %v1666
      %1732 = vst.msk [vmem:[%s175 + $0x80] sm:$0xf] %vm1699, %v1667
      %1733 = vst.msk [vmem:[%s175 + $0x84] sm:$0xf] %vm1699, %v1668
      %1734 = vst.msk [vmem:[%s175 + $0x88] sm:$0xf] %vm1699, %v1669
      %1735 = vst.msk [vmem:[%s175 + $0x8c] sm:$0xf] %vm1699, %v1670
      %1736 = vst.msk [vmem:[%s175 + $0x90] sm:$0xf] %vm1699, %v1671
      %1737 = vst.msk [vmem:[%s175 + $0x94] sm:$0xf] %vm1699, %v1672
      %1738 = vst.msk [vmem:[%s175 + $0x98] sm:$0xf] %vm1699, %v1673
      %1739 = vst.msk [vmem:[%s175 + $0x9c] sm:$0xf] %vm1699, %v1674
      %1740 = vst.msk [vmem:[%s175 + $0xa0] sm:$0xf] %vm1699, %v1675
      %1741 = vst.msk [vmem:[%s175 + $0xa4] sm:$0xf] %vm1699, %v1676
      %1742 = vst.msk [vmem:[%s175 + $0xa8] sm:$0xf] %vm1699, %v1677
      %1743 = vst.msk [vmem:[%s175 + $0xac] sm:$0xf] %vm1699, %v1678
      %1744 = vst.msk [vmem:[%s175 + $0xb0] sm:$0xf] %vm1699, %v1679
      %1745 = vst.msk [vmem:[%s175 + $0xb4] sm:$0xf] %vm1699, %v1680
      %1746 = vst.msk [vmem:[%s175 + $0xb8] sm:$0xf] %vm1699, %v1681
      %1747 = vst.msk [vmem:[%s175 + $0xbc] sm:$0xf] %vm1699, %v1682
      %1748 = vst.msk [vmem:[%s175 + $0xc0] sm:$0xf] %vm1699, %v1683
      %1749 = vst.msk [vmem:[%s175 + $0xc4] sm:$0xf] %vm1699, %v1684
      %1750 = vst.msk [vmem:[%s175 + $0xc8] sm:$0xf] %vm1699, %v1685
      %1751 = vst.msk [vmem:[%s175 + $0xcc] sm:$0xf] %vm1699, %v1686
      %1752 = vst.msk [vmem:[%s175 + $0xd0] sm:$0xf] %vm1699, %v1687
      %1753 = vst.msk [vmem:[%s175 + $0xd4] sm:$0xf] %vm1699, %v1688
      %1754 = vst.msk [vmem:[%s175 + $0xd8] sm:$0xf] %vm1699, %v1689
      %1755 = vst.msk [vmem:[%s175 + $0xdc] sm:$0xf] %vm1699, %v1690
      %1756 = vst.msk [vmem:[%s175 + $0xe0] sm:$0xf] %vm1699, %v1691
      %1757 = vst.msk [vmem:[%s175 + $0xe4] sm:$0xf] %vm1699, %v1692
      %1758 = vst.msk [vmem:[%s175 + $0xe8] sm:$0xf] %vm1699, %v1693
      %1759 = vst.msk [vmem:[%s175 + $0xec] sm:$0xf] %vm1699, %v1694
      %1760 = vst.msk [vmem:[%s175 + $0xf0] sm:$0xf] %vm1699, %v1695
      %1761 = vst.msk [vmem:[%s175 + $0xf4] sm:$0xf] %vm1699, %v1696
      %1762 = vst.msk [vmem:[%s175 + $0xf8] sm:$0xf] %vm1699, %v1697
      %1763 = vst.msk [vmem:[%s175 + $0xfc] sm:$0xf] %vm1699, %v1698
      %s1764 = smul.u32 64, %s14
      %p1765 = scmp.lt.s32.totalorder %s1764, 255
      %s1766 = scalar_select %p1765, %s1764, 255
      %s1767 = smul.addr %s1766, 4
      %s1768 = scalar_lea.vmem %s3, %s1767
      // Predicated region
      $region33: #{tpu_custom_call.1} parent=31 // pred_check
        %p1769 = pneg %p100
      $region34: #{tpu_custom_call.1} parent=31 // pred_check_branch
        %1771 = sbr.rel (%p1769) target = $region36
      $region35: #{tpu_custom_call.1} parent=31 // pred_region
        %s1772 = smul.u32 64, %s14
      $region36: #{tpu_custom_call.1} parent=31 // pred_fallthru
        _
    $region32: #{tpu_custom_call.1} parent=5 // pred_fallthru
      _
    %p1773 = scmp.le.s32.totalorder 2, %s9
    // Predicated region
    $region37: #{tpu_custom_call.1} parent=5 // pred_check
      %p1774 = pneg %p1773
    $region38: #{tpu_custom_call.1} parent=5 // pred_check_branch
      %1776 = sbr.rel (%p1774) target = $region40
    $region39: #{tpu_custom_call.1} parent=5 // pred_region
      %s1777 = ssub.s32 %s9, 2
      // Predicated region
      $region41: #{tpu_custom_call.1} parent=39 // pred_check
        %p1778 = pneg %p106
      $region42: #{tpu_custom_call.1} parent=39 // pred_check_branch
        %1780 = sbr.rel (%p1778) target = $region44
      $region43: #{tpu_custom_call.1} parent=39 // pred_region
        %s1781 = smul.u32 64, %s15
        %p1782 = scmp.lt.s32.totalorder %s1781, 255
        %s1783 = scalar_select %p1782, %s1781, 255
        %s1784 = smul.addr %s1783, 4
        %s1785 = scalar_lea.vmem %s3, %s1784
      $region44: #{tpu_custom_call.1} parent=39 // pred_fallthru
        _
    $region40: #{tpu_custom_call.1} parent=5 // pred_fallthru
      _
  $region6: #{tpu_custom_call.1} parent=0 // loop_footer
    %s13 = sadd.s32 1, %s9
  $region7: #{tpu_custom_call.1} parent=0 // loop_footer_branch
    %8 = sbr.rel target = $region3
  $region8: #{tpu_custom_call.1} parent=0 // loop_exit
    _

</llo_original>
